<compile_context>
chip_gen: v7x
topology: tpu7x:2x2x1
jax: 0.10.0
libtpu: 0.0.40
codegen_flags: <defaults>
</compile_context>

<pallas_src>
import math
import functools

import jax
import jax.numpy as jnp
from jax.experimental import pallas as pl
from jax.experimental.pallas import tpu as pltpu

EPS = 1e-5
EXPANSION = 4          # ResNeXt bottleneck expansion
CPACK = 128            # lane-dense packed output channels per grouped-conv super-group
FUSE_MAX_P = 1024      # row threshold below which conv+BN(+res)+ReLU fuse into ONE kernel


# --------------------------- generation-aware limits ---------------------------

def _vmem_cap_bytes():
    try:
        cap = getattr(pltpu.get_tpu_info(), "vmem_capacity_bytes", None)
        if cap:
            return int(0.75 * cap)      # ~96 MiB v5e/v6e, ~48 MiB v7x
    except Exception:
        pass
    return 48 << 20


_VMEM_CAP = _vmem_cap_bytes()
_TM_TARGET = 1024 if _VMEM_CAP > (64 << 20) else 512


def _pick_tile(dim, target, align):
    """Largest tile <= target that divides dim and is a multiple of `align`
    (or the full dim, which is always a legal BlockSpec block)."""
    if dim <= target:
        return dim
    d = (target // align) * align
    while d >= align:
        if dim % d == 0:
            return d
        d -= align
    return dim


def _split_tm(p):
    # 16-aligned (bf16 packs 2 rows per sublane); keep >=2 P tiles for the v7x second TC.
    tm = _pick_tile(p, _TM_TARGET, 16)
    if p // tm < 2:
        tm = _pick_tile(p, max(16, p // 2), 16)
    return tm


def _vmem_limit(tile_bytes):
    # BlockSpec double-buffers every pipelined operand; add headroom.
    need = 2 * sum(tile_bytes) + (4 << 20)
    return int(min(max(need, 16 << 20), _VMEM_CAP))


# --------------------------- Pallas kernels ------------------------------------

def _conv_bn_act_fused_kernel(x_ref, w_ref, g_ref, b_ref, o_ref, *, relu, inv_count):
    """Full-P conv tile + exact BN batch stats + affine + ReLU, one pass, no HBM intermediates."""
    acc = jnp.dot(x_ref[0], w_ref[0], preferred_element_type=jnp.float32)   # (P, tn) f32
    s = jnp.sum(acc, axis=0, keepdims=True)                                 # (1, tn)
    ss = jnp.sum(acc * acc, axis=0, keepdims=True)
    mean = s * inv_count
    var = jnp.maximum(ss * inv_count - mean * mean, 0.0)
    inv = jax.lax.rsqrt(var + EPS)
    scale = g_ref[...] * inv
    shift = b_ref[...] - mean * scale
    v = acc * scale + shift
    if relu:
        v = jnp.maximum(v, 0.0)
    o_ref[...] = v.astype(o_ref.dtype)


def _conv_bn_res_act_fused_kernel(x_ref, w_ref, g_ref, b_ref, r_ref, o_ref, *, relu, inv_count):
    """Same as above plus residual add; residual arrives in native dtype and is upcast here."""
    acc = jnp.dot(x_ref[0], w_ref[0], preferred_element_type=jnp.float32)
    s = jnp.sum(acc, axis=0, keepdims=True)
    ss = jnp.sum(acc * acc, axis=0, keepdims=True)
    mean = s * inv_count
    var = jnp.maximum(ss * inv_count - mean * mean, 0.0)
    inv = jax.lax.rsqrt(var + EPS)
    scale = g_ref[...] * inv
    shift = b_ref[...] - mean * scale
    v = acc * scale + shift + r_ref[...].astype(jnp.float32)
    if relu:
        v = jnp.maximum(v, 0.0)
    o_ref[...] = v.astype(o_ref.dtype)


def _matmul_stats_kernel(x_ref, w_ref, y_ref, ps_ref, pss_ref):
    """Split path: bf16 matmul tile (K uncut, no scratch), y stored bf16, f32 partial BN stats."""
    acc = jnp.dot(x_ref[0], w_ref[0], preferred_element_type=jnp.float32)
    y_ref[...] = acc.astype(y_ref.dtype)
    ps_ref[0] = jnp.sum(acc, axis=0, keepdims=True)
    pss_ref[0] = jnp.sum(acc * acc, axis=0, keepdims=True)


def _bn_act_kernel(y_ref, sc_ref, sh_ref, o_ref, *, relu):
    v = y_ref[...].astype(jnp.float32) * sc_ref[...] + sh_ref[...]
    if relu:
        v = jnp.maximum(v, 0.0)
    o_ref[...] = v.astype(o_ref.dtype)


def _bn_res_act_kernel(y_ref, sc_ref, sh_ref, r_ref, o_ref, *, relu):
    v = (y_ref[...].astype(jnp.float32) * sc_ref[...] + sh_ref[...]
         + r_ref[...].astype(jnp.float32))
    if relu:
        v = jnp.maximum(v, 0.0)
    o_ref[...] = v.astype(o_ref.dtype)


# --------------------------- im2col / weight packing ---------------------------

def _conv_geometry(x, kh, kw, stride, padding):
    n, h, w, _ = x.shape
    ho = (h + 2 * padding - kh) // stride + 1
    wo = (w + 2 * padding - kw) // stride + 1
    return n, ho, wo


def _im2col_1x1(x, stride):
    xs = x[:, ::stride, ::stride, :] if stride > 1 else x
    n, ho, wo, cin = xs.shape
    return xs.reshape(1, n * ho * wo, cin).astype(jnp.bfloat16)


def _im2col_dense(x, kh, kw, stride, padding):
    n, ho, wo = _conv_geometry(x, kh, kw, stride, padding)
    cin = x.shape[-1]
    xp = jnp.pad(x.astype(jnp.bfloat16),
                 ((0, 0), (padding, padding), (padding, padding), (0, 0)))
    taps = [xp[:, ky:ky + (ho - 1) * stride + 1:stride,
               kx:kx + (wo - 1) * stride + 1:stride, :]
            for ky in range(kh) for kx in range(kw)]
    pt = jnp.stack(taps, axis=3)                              # (N, Ho, Wo, T, Cin)
    return pt.reshape(1, n * ho * wo, kh * kw * cin)


def _im2col_grouped(x, stride, padding, S):
    """Grouped 3x3 taps built directly in (S, P, 9*128) super-group-major layout (no transpose)."""
    n, ho, wo = _conv_geometry(x, 3, 3, stride, padding)
    p = n * ho * wo
    xp = jnp.pad(x.astype(jnp.bfloat16),
                 ((0, 0), (padding, padding), (padding, padding), (0, 0)))
    per_s = []
    for s in range(S):
        taps = [xp[:, ky:ky + (ho - 1) * stride + 1:stride,
                   kx:kx + (wo - 1) * stride + 1:stride,
                   s * CPACK:(s + 1) * CPACK]
                for ky in range(3) for kx in range(3)]
        per_s.append(jnp.stack(taps, axis=3).reshape(p, 9 * CPACK))
    return jnp.stack(per_s, axis=0)                           # (S, P, 1152)


def _pack_1x1(w):
    cout, cin = w.shape[0], w.shape[1]
    return w.reshape(cout, cin).T.reshape(1, cin, cout).astype(jnp.bfloat16)


def _pack_dense(w, cout_pad=None):
    cout, cin, kh, kw = w.shape
    coutp = cout_pad or cout
    wt = jnp.transpose(w, (2, 3, 1, 0)).reshape(kh * kw * cin, cout)
    if coutp != cout:
        wt = jnp.pad(wt, ((0, 0), (0, coutp - cout)))
    return wt.reshape(1, kh * kw * cin, coutp).astype(jnp.bfloat16)


def _pack_grouped_3x3(w, groups):
    """(cout, cg, 3, 3) -> lane-dense block-diagonal (S, 9*128, 128), group-major channel order."""
    cout, cg = w.shape[0], w.shape[1]
    assert CPACK % cg == 0 and cout % CPACK == 0
    gpack = CPACK // cg
    S = cout // CPACK
    wr = w.reshape(S, gpack, cg, cg, 3, 3)                    # (s, gl, oc, ic, ky, kx)
    wt = wr.transpose(0, 4, 5, 1, 3, 2)                       # (s, ky, kx, gl, ic, oc)
    eye = jnp.eye(gpack, dtype=w.dtype)
    wbd = jnp.einsum('skxgio,gh->skxgiho', wt, eye)           # block-diagonal over packed groups
    return wbd.reshape(S, 9 * CPACK, CPACK).astype(jnp.bfloat16)


def _pad_vec(v, n):
    v = jnp.asarray(v, jnp.float32)
    return jnp.pad(v, (0, n - v.shape[0]))


# --------------------------- conv + BN drivers ----------------------------------

def _conv_bn_fused(xb, wb, g, b, res, relu, out_dtype):
    """One kernel: matmul + exact BN stats over full P + affine (+res) (+ReLU)."""
    S, P, K = xb.shape
    Cn = wb.shape[2]
    ctot = S * Cn
    tn = _pick_tile(Cn, 256, 128)
    if Cn // tn == 1 and Cn >= 256:
        tn = Cn // 2                      # >=2 parallel output tiles for the v7x second TC
    n_nt = Cn // tn

    x_spec = pl.BlockSpec((1, P, K), lambda s, j: (s, 0, 0))
    w_spec = pl.BlockSpec((1, K, tn), lambda s, j: (s, 0, j))
    v_spec = pl.BlockSpec((1, tn), lambda s, j: (0, s * n_nt + j))
    o_spec = pl.BlockSpec((P, tn), lambda s, j: (0, s * n_nt + j))

    args = [xb, wb, g, b]
    in_specs = [x_spec, w_spec, v_spec, v_spec]
    tiles = [P * K * 2, K * tn * 2, tn * 4, tn * 4, P * tn * jnp.dtype(out_dtype).itemsize]
    if res is None:
        kernel = functools.partial(_conv_bn_act_fused_kernel, relu=relu, inv_count=1.0 / float(P))
    else:
        kernel = functools.partial(_conv_bn_res_act_fused_kernel, relu=relu,
                                   inv_count=1.0 / float(P))
        args.append(res)
        in_specs.append(pl.BlockSpec((P, tn), lambda s, j: (0, s * n_nt + j)))
        tiles.append(P * tn * res.dtype.itemsize)

    return pl.pallas_call(
        kernel,
        out_shape=jax.ShapeDtypeStruct((P, ctot), out_dtype),
        grid=(S, n_nt),
        in_specs=in_specs,
        out_specs=o_spec,
        compiler_params=pltpu.CompilerParams(
            dimension_semantics=("parallel", "parallel"),
            vmem_limit_bytes=_vmem_limit(tiles)),
    )(*args)


def _bn_act_apply(y, scale, shift, *, relu, residual, out_dtype):
    """Lane-dense fused BN affine (+ residual) (+ ReLU) over (P, C) (split path epilogue)."""
    p, c = y.shape
    tm = _split_tm(p)
    n_pt = p // tm

    args = [y, scale, shift]
    in_specs = [pl.BlockSpec((tm, c), lambda i: (i, 0)),
                pl.BlockSpec((1, c), lambda i: (0, 0)),
                pl.BlockSpec((1, c), lambda i: (0, 0))]
    tiles = [tm * c * y.dtype.itemsize, c * 4, c * 4, tm * c * jnp.dtype(out_dtype).itemsize]
    if residual is None:
        kernel = functools.partial(_bn_act_kernel, relu=relu)
    else:
        kernel = functools.partial(_bn_res_act_kernel, relu=relu)
        args.append(residual)
        in_specs.append(pl.BlockSpec((tm, c), lambda i: (i, 0)))
        tiles.append(tm * c * residual.dtype.itemsize)

    return pl.pallas_call(
        kernel,
        out_shape=jax.ShapeDtypeStruct((p, c), out_dtype),
        grid=(n_pt,),
        in_specs=in_specs,
        out_specs=pl.BlockSpec((tm, c), lambda i: (i, 0)),
        compiler_params=pltpu.CompilerParams(
            dimension_semantics=("parallel",),
            vmem_limit_bytes=_vmem_limit(tiles)),
    )(*args)


def _conv_bn_split(xb, wb, g, b, res, relu, out_dtype):
    """Two-kernel path for large P: matmul+partial-stats (y in bf16), XLA stat reduce, BN apply."""
    S, P, K = xb.shape
    Cn = wb.shape[2]
    ctot = S * Cn
    tm = _split_tm(P)
    n_pt = P // tm
    tn = _pick_tile(Cn, 256, 128)
    n_nt = Cn // tn

    y, psum, psumsq = pl.pallas_call(
        _matmul_stats_kernel,
        out_shape=(jax.ShapeDtypeStruct((P, ctot), jnp.bfloat16),
                   jax.ShapeDtypeStruct((n_pt, 1, ctot), jnp.float32),
                   jax.ShapeDtypeStruct((n_pt, 1, ctot), jnp.float32)),
        grid=(S, n_pt, n_nt),
        in_specs=[pl.BlockSpec((1, tm, K), lambda s, i, j: (s, i, 0)),
                  pl.BlockSpec((1, K, tn), lambda s, i, j: (s, 0, j))],
        out_specs=(pl.BlockSpec((tm, tn), lambda s, i, j: (i, s * n_nt + j)),
                   pl.BlockSpec((1, 1, tn), lambda s, i, j: (i, 0, s * n_nt + j)),
                   pl.BlockSpec((1, 1, tn), lambda s, i, j: (i, 0, s * n_nt + j))),
        compiler_params=pltpu.CompilerParams(
            dimension_semantics=("parallel", "parallel", "parallel"),
            vmem_limit_bytes=_vmem_limit([tm * K * 2, K * tn * 2, tm * tn * 2, tn * 4, tn * 4])),
    )(xb, wb)

    # Exact training-mode BN stats from the f32 partial sums (tiny (n_pt, C) reduce in XLA).
    s = jnp.sum(psum, axis=0)                                  # (1, ctot)
    ss = jnp.sum(psumsq, axis=0)
    mean = s / float(P)
    var = jnp.maximum(ss / float(P) - mean * mean, 0.0)
    inv = jax.lax.rsqrt(var + EPS)
    scale = g * inv
    shift = b - mean * scale
    return _bn_act_apply(y, scale, shift, relu=relu, residual=res, out_dtype=out_dtype)


def conv_bn_act(x, wpk, gamma2d, beta2d, *, kh=1, kw=1, stride=1, padding=0,
                grouped=False, relu=True, residual=None, out_dtype=jnp.bfloat16):
    """Conv2d(bias=False) + BatchNorm2d(batch stats) [+ residual add] [+ ReLU]. x: NHWC."""
    n, ho, wo = _conv_geometry(x, kh, kw, stride, padding)
    p = n * ho * wo
    S, K, Cn = wpk.shape
    ctot = S * Cn

    if grouped:
        xb = _im2col_grouped(x, stride, padding, S)
    elif kh == 1 and kw == 1:
        xb = _im2col_1x1(x, stride)
    else:
        xb = _im2col_dense(x, kh, kw, stride, padding)

    res2d = residual.reshape(p, ctot) if residual is not None else None   # native dtype

    if p <= FUSE_MAX_P:
        out = _conv_bn_fused(xb, wpk, gamma2d, beta2d, res2d, relu, out_dtype)
    else:
        out = _conv_bn_split(xb, wpk, gamma2d, beta2d, res2d, relu, out_dtype)
    return out.reshape(n, ho, wo, ctot)


def maxpool_3x3_s2_p1(x):
    """MaxPool2d(3, stride=2, padding=1) on NHWC via separable strided-slice maxima (XLA)."""
    n, h, w, c = x.shape
    ho = (h + 2 - 3) // 2 + 1
    wo = (w + 2 - 3) // 2 + 1
    xp = jnp.pad(x, ((0, 0), (1, 1), (1, 1), (0, 0)), constant_values=-jnp.inf)
    v = None
    for ky in range(3):
        t = xp[:, ky:ky + 2 * (ho - 1) + 1:2, :, :]
        v = t if v is None else jnp.maximum(v, t)
    out = None
    for kx in range(3):
        t = v[:, :, kx:kx + 2 * (wo - 1) + 1:2, :]
        out = t if out is None else jnp.maximum(out, t)
    return out


# --------------------------- parameter init (packed once) ----------------------

def _init_conv(key, cout, cin_g, kh, kw):
    # PyTorch init in the module: normal(0, sqrt(2 / (kh*kw*Cout)))
    nfan = kh * kw * cout
    return jax.random.normal(key, (cout, cin_g, kh, kw), jnp.float32) * math.sqrt(2.0 / nfan)


def init_resnext(key, layers=(1, 1, 1, 1), input_channel=3, num_group=32):
    keys = iter(jax.random.split(key, 256))
    w1 = _init_conv(next(keys), 64, input_channel, 7, 7)
    params = {
        # Stem output channels zero-padded 64 -> 128 so every store uses full 128 lanes.
        'conv1_w': _pack_dense(w1, cout_pad=CPACK),
        'bn1_g': _pad_vec(jnp.ones((64,), jnp.float32), CPACK).reshape(1, -1),
        'bn1_b': _pad_vec(jnp.zeros((64,), jnp.float32), CPACK).reshape(1, -1),
    }
    inplanes = 64
    for li, (planes, nblocks, stride) in enumerate(
            zip((64, 128, 256, 512), layers, (1, 2, 2, 2)), start=1):
        blocks = []
        for bidx in range(nblocks):
            s = stride if bidx == 0 else 1
            width = planes * 2
            blk = {
                'w1': _pack_1x1(_init_conv(next(keys), width, inplanes, 1, 1)),
                'g1': jnp.ones((1, width), jnp.float32),
                'b1': jnp.zeros((1, width), jnp.float32),
                'w2': _pack_grouped_3x3(
                    _init_conv(next(keys), width, width // num_group, 3, 3), num_group),
                'g2': jnp.ones((1, width), jnp.float32),
                'b2': jnp.zeros((1, width), jnp.float32),
                'w3': _pack_1x1(_init_conv(next(keys), planes * EXPANSION, width, 1, 1)),
                'g3': jnp.ones((1, planes * EXPANSION), jnp.float32),
                'b3': jnp.zeros((1, planes * EXPANSION), jnp.float32),
                'stride': s,
            }
            if s != 1 or inplanes != planes * EXPANSION:
                blk['wd'] = _pack_1x1(_init_conv(next(keys), planes * EXPANSION, inplanes, 1, 1))
                blk['gd'] = jnp.ones((1, planes * EXPANSION), jnp.float32)
                blk['bd'] = jnp.zeros((1, planes * EXPANSION), jnp.float32)
            blocks.append(blk)
            inplanes = planes * EXPANSION
        params[f'layer{li}'] = blocks
    return params


# --------------------------- forward --------------------------------------------

def block_forward(blk, x):
    # conv1/conv2/ds/conv3 outputs are bf16: they only feed matmuls / residual adds downstream.
    a1 = conv_bn_act(x, blk['w1'], blk['g1'], blk['b1'],
                     relu=True, out_dtype=jnp.bfloat16)
    a2 = conv_bn_act(a1, blk['w2'], blk['g2'], blk['b2'],
                     kh=3, kw=3, stride=blk['stride'], padding=1, grouped=True,
                     relu=True, out_dtype=jnp.bfloat16)
    if 'wd' in blk:
        residual = conv_bn_act(x, blk['wd'], blk['gd'], blk['bd'],
                               stride=blk['stride'], relu=False, out_dtype=jnp.bfloat16)
    else:
        residual = x
    # conv3 + BN3 + residual add + final ReLU fused into one kernel (residual in native dtype).
    return conv_bn_act(a2, blk['w3'], blk['g3'], blk['b3'],
                       relu=True, residual=residual, out_dtype=jnp.bfloat16)


def resnext_forward(params, x_nchw):
    x = jnp.transpose(x_nchw.astype(jnp.float32), (0, 2, 3, 1))    # NCHW -> NHWC
    x0p = conv_bn_act(x, params['conv1_w'], params['bn1_g'], params['bn1_b'],
                      kh=7, kw=7, stride=2, padding=3, relu=True, out_dtype=jnp.float32)
    x0 = x0p[..., :64]                                             # drop lane-padding channels
    cur = maxpool_3x3_s2_p1(x0)
    feats = []
    for li in range(1, 5):
        for blk in params[f'layer{li}']:
            cur = block_forward(blk, cur)
        feats.append(cur)
    x1, x2, x3, x4 = feats
    to_nchw = lambda t: jnp.transpose(t.astype(jnp.float32), (0, 3, 1, 2))
    return [to_nchw(x4), to_nchw(x3), to_nchw(x2), to_nchw(x1), to_nchw(x0)]


# --------------------------- pure-JAX reference for self-checks -----------------

def _ref_conv_bn_relu(x, w, gamma, beta, stride, padding, groups, relu=True):
    y = jax.lax.conv_general_dilated(
        x, jnp.transpose(w, (2, 3, 1, 0)),
        window_strides=(stride, stride),
        padding=[(padding, padding), (padding, padding)],
        dimension_numbers=('NHWC', 'HWIO', 'NHWC'),
        feature_group_count=groups)
    mean = jnp.mean(y, axis=(0, 1, 2))
    var = jnp.mean((y - mean) ** 2, axis=(0, 1, 2))
    out = (y - mean) * jax.lax.rsqrt(var + EPS) * gamma + beta
    return jnp.maximum(out, 0.0) if relu else out


# --------------------------- main ------------------------------------------------

if __name__ == "__main__":
    key = jax.random.PRNGKey(0)
    kp, kx, k1, k2, k3, k4 = jax.random.split(key, 6)

    # Self-check 1: fused path + block-diagonal grouped 3x3 packing (loose bf16 tolerance).
    xg = jax.random.normal(k1, (2, 8, 8, 128), jnp.float32)
    wg = _init_conv(k2, 128, 4, 3, 3)
    gg = 1.0 + 0.1 * jax.random.normal(k3, (128,), jnp.float32)
    bg = 0.1 * jax.random.normal(k4, (128,), jnp.float32)
    out_g = conv_bn_act(xg, _pack_grouped_3x3(wg, 32), gg.reshape(1, -1), bg.reshape(1, -1),
                        kh=3, kw=3, stride=1, padding=1, grouped=True,
                        relu=True, out_dtype=jnp.float32)
    ref_g = _ref_conv_bn_relu(xg, wg, gg, bg, 1, 1, 32)
    assert float(jnp.max(jnp.abs(out_g - ref_g))) < 0.1, "grouped conv+BN mismatch"

    # Self-check 2: split path (large P) + lane-padded 7x7 stem.
    x7 = jax.random.normal(k1, (2, 64, 64, 3), jnp.float32)
    w7 = _init_conv(k2, 64, 3, 7, 7)
    out7 = conv_bn_act(x7, _pack_dense(w7, cout_pad=CPACK),
                       _pad_vec(jnp.ones((64,), jnp.float32), CPACK).reshape(1, -1),
                       _pad_vec(jnp.zeros((64,), jnp.float32), CPACK).reshape(1, -1),
                       kh=7, kw=7, stride=2, padding=3, relu=True, out_dtype=jnp.float32)
    ref7 = _ref_conv_bn_relu(x7, w7, jnp.ones((64,), jnp.float32),
                             jnp.zeros((64,), jnp.float32), 2, 3, 1)
    assert float(jnp.max(jnp.abs(out7[..., :64] - ref7))) < 0.1, "stem conv+BN mismatch"

    # ResNeXt(block=Bottleneck, layers=[1,1,1,1], input_channel=3, num_group=32)
    params = init_resnext(kp, layers=(1, 1, 1, 1), input_channel=3, num_group=32)
    x = jax.random.normal(kx, (2, 3, 64, 64), jnp.float32)   # NCHW like PyTorch
    feats = resnext_forward(params, x)
    feats = jax.block_until_ready(feats)

    expected = [(2, 2048, 2, 2), (2, 1024, 4, 4), (2, 512, 8, 8),
                (2, 256, 16, 16), (2, 64, 32, 32)]
    assert [tuple(f.shape) for f in feats] == expected, [f.shape for f in feats]
    assert all(bool(jnp.all(jnp.isfinite(f))) for f in feats)
    print("KERNEL_OK")
</pallas_src>

<mosaic_0001>
module attributes {stable_mosaic.version = 11 : i64} {
  func.func @_conv_bn_act_fused_kernel(%arg0: i32, %arg1: i32, %arg2: memref<1x128x1152xbf16, #tpu.memory_space<vmem>>, %arg3: memref<1x1152x128xbf16, #tpu.memory_space<vmem>>, %arg4: memref<1x128xf32, #tpu.memory_space<vmem>>, %arg5: memref<1x128xf32, #tpu.memory_space<vmem>>, %arg6: memref<128x128xf32, #tpu.memory_space<vmem>>) attributes {dimension_semantics = [#tpu.dimension_semantics<parallel>, #tpu.dimension_semantics<parallel>], iteration_bounds = array<i64: 1, 1>, scalar_prefetch = 0 : i64, scratch_operands = 0 : i64, tpu.core_type = #tpu.core_type<tc>, window_params = [{transform_indices = @transform_0, window_bounds = array<i64: 1, 128, 1152>}, {transform_indices = @transform_1, window_bounds = array<i64: 1, 1152, 128>}, {transform_indices = @transform_2, window_bounds = array<i64: 1, 128>}, {transform_indices = @transform_3, window_bounds = array<i64: 1, 128>}, {transform_indices = @transform_4, window_bounds = array<i64: 128, 128>}]} {
    %c0 = arith.constant 0 : index
    %c0_0 = arith.constant 0 : index
    %c0_1 = arith.constant 0 : index
    %0 = vector.load %arg2[%c0, %c0_0, %c0_1] : memref<1x128x1152xbf16, #tpu.memory_space<vmem>>, vector<1x128x1152xbf16>
    %1 = vector.shape_cast %0 : vector<1x128x1152xbf16> to vector<128x1152xbf16>
    %c0_2 = arith.constant 0 : index
    %c0_3 = arith.constant 0 : index
    %c0_4 = arith.constant 0 : index
    %2 = vector.load %arg3[%c0_2, %c0_3, %c0_4] : memref<1x1152x128xbf16, #tpu.memory_space<vmem>>, vector<1x1152x128xbf16>
    %3 = vector.shape_cast %2 : vector<1x1152x128xbf16> to vector<1152x128xbf16>
    %cst = arith.constant dense<0.000000e+00> : vector<128x128xf32>
    %4 = tpu.matmul %1, %3, %cst {dimension_numbers = #tpu.dot_dimension_numbers<[1], [0], [0], [1], [0, 0, 1, 1], [], []>} : vector<128x1152xbf16>, vector<1152x128xbf16>, vector<128x128xf32> -> vector<128x128xf32>
    %cst_5 = arith.constant dense<0.000000e+00> : vector<128xf32>
    %5 = vector.multi_reduction <add>, %4, %cst_5 [0] : vector<128x128xf32> to vector<128xf32>
    %6 = vector.shape_cast %5 : vector<128xf32> to vector<1x128xf32>
    %7 = arith.mulf %4, %4 : vector<128x128xf32>
    %cst_6 = arith.constant dense<0.000000e+00> : vector<128xf32>
    %8 = vector.multi_reduction <add>, %7, %cst_6 [0] : vector<128x128xf32> to vector<128xf32>
    %9 = vector.shape_cast %8 : vector<128xf32> to vector<1x128xf32>
    %cst_7 = arith.constant 7.812500e-03 : f32
    %10 = vector.broadcast %cst_7 : f32 to vector<1x128xf32>
    %11 = arith.mulf %6, %10 : vector<1x128xf32>
    %cst_8 = arith.constant 7.812500e-03 : f32
    %12 = vector.broadcast %cst_8 : f32 to vector<1x128xf32>
    %13 = arith.mulf %9, %12 : vector<1x128xf32>
    %14 = arith.mulf %11, %11 : vector<1x128xf32>
    %15 = arith.subf %13, %14 : vector<1x128xf32>
    %cst_9 = arith.constant 0.000000e+00 : f32
    %16 = vector.broadcast %cst_9 : f32 to vector<1x128xf32>
    %17 = arith.maximumf %15, %16 : vector<1x128xf32>
    %cst_10 = arith.constant 9.99999974E-6 : f32
    %18 = vector.broadcast %cst_10 : f32 to vector<1x128xf32>
    %19 = arith.addf %17, %18 : vector<1x128xf32>
    %20 = math.rsqrt %19 : vector<1x128xf32>
    %c0_11 = arith.constant 0 : index
    %c0_12 = arith.constant 0 : index
    %21 = vector.load %arg4[%c0_11, %c0_12] : memref<1x128xf32, #tpu.memory_space<vmem>>, vector<1x128xf32>
    %22 = arith.mulf %21, %20 : vector<1x128xf32>
    %c0_13 = arith.constant 0 : index
    %c0_14 = arith.constant 0 : index
    %23 = vector.load %arg5[%c0_13, %c0_14] : memref<1x128xf32, #tpu.memory_space<vmem>>, vector<1x128xf32>
    %24 = arith.mulf %11, %22 : vector<1x128xf32>
    %25 = arith.subf %23, %24 : vector<1x128xf32>
    %26 = vector.broadcast %22 : vector<1x128xf32> to vector<128x128xf32>
    %27 = arith.mulf %4, %26 : vector<128x128xf32>
    %28 = vector.broadcast %25 : vector<1x128xf32> to vector<128x128xf32>
    %29 = arith.addf %27, %28 : vector<128x128xf32>
    %cst_15 = arith.constant 0.000000e+00 : f32
    %30 = vector.broadcast %cst_15 : f32 to vector<128x128xf32>
    %31 = arith.maximumf %29, %30 : vector<128x128xf32>
    %c0_16 = arith.constant 0 : index
    %c0_17 = arith.constant 0 : index
    %32 = vector.load %arg6[%c0_16, %c0_17] : memref<128x128xf32, #tpu.memory_space<vmem>>, vector<128x128xf32>
    tpu.vector_store %arg6[%c0_16, %c0_17], %31 {strides = array<i32>} : memref<128x128xf32, #tpu.memory_space<vmem>>, vector<128x128xf32>,
    return
  }
  func.func @transform_0(%arg0: i32, %arg1: i32) -> (i32, i32, i32) {
    %c0_i32 = arith.constant 0 : i32
    %c0_i32_0 = arith.constant 0 : i32
    %c0_i32_1 = arith.constant 0 : i32
    return %arg0, %c0_i32, %c0_i32_0 : i32, i32, i32
  }
  func.func @transform_1(%arg0: i32, %arg1: i32) -> (i32, i32, i32) {
    %c0_i32 = arith.constant 0 : i32
    %c0_i32_0 = arith.constant 0 : i32
    return %arg0, %c0_i32, %arg1 : i32, i32, i32
  }
  func.func @transform_2(%arg0: i32, %arg1: i32) -> (i32, i32) {
    %c1_i32 = arith.constant 1 : i32
    %0 = arith.muli %arg0, %c1_i32 : i32
    %1 = arith.addi %0, %arg1 : i32
    %c0_i32 = arith.constant 0 : i32
    %c0_i32_0 = arith.constant 0 : i32
    return %c0_i32, %1 : i32, i32
  }
  func.func @transform_3(%arg0: i32, %arg1: i32) -> (i32, i32) {
    %c1_i32 = arith.constant 1 : i32
    %0 = arith.muli %arg0, %c1_i32 : i32
    %1 = arith.addi %0, %arg1 : i32
    %c0_i32 = arith.constant 0 : i32
    %c0_i32_0 = arith.constant 0 : i32
    return %c0_i32, %1 : i32, i32
  }
  func.func @transform_4(%arg0: i32, %arg1: i32) -> (i32, i32) {
    %c1_i32 = arith.constant 1 : i32
    %0 = arith.muli %arg0, %c1_i32 : i32
    %1 = arith.addi %0, %arg1 : i32
    %c0_i32 = arith.constant 0 : i32
    %c0_i32_0 = arith.constant 0 : i32
    return %c0_i32, %1 : i32, i32
  }
}

</mosaic_0001>

<llo_original>
// kernel: tpu_custom_call.1
$region0: #{tpu_custom_call.1}
  #allocation0 [shape = 'u32[]', space=smem, size = 0x4, offset = 0x4, fixed_abs, tag = 'smem constant byte address 0x4 - core index']
  #allocation1 [shape = 'u32[144,128]{1,0:T(1,128)}', space=vmem, size = 0x12000, scoped, tag = 'internal scratch']
  %s0 = inlined_call_operand.hbm [shape: bf16[1,128,1152], index: 0, kind: input, shape index: {}]
  %s1 = inlined_call_operand.hbm [shape: bf16[1,1152,128], index: 1, kind: input, shape index: {}]
  %s2 = inlined_call_operand.vmem [shape: f32[1,128], index: 2, kind: input, shape index: {}]
  %s3 = inlined_call_operand.vmem [shape: f32[1,128], index: 3, kind: input, shape index: {}]
  %s4 = inlined_call_operand.hbm [shape: f32[128,128], index: 4, kind: output, shape index: {}]
  %s5 = sld [smem:[#allocation0]]
  $region34: #{tpu_custom_call.1} parent=0
    _
  %s7 = ssub.s32 1, %s5
  %s8 = scalar_select 0, %s7, %s5
  $region1: #{tpu_custom_call.1} parent=0
    #allocation2 [shape = 'u8[294912]{0}', space=vmem, size = 0x48000, scoped, tag = 'input window, operand 0, single buffered']
    #allocation3 [shape = 's32[1]{0}', space=sflag, size = 0x4, scoped, tag = 'scoped memory for tpu_custom_call.1']
    #allocation4 [shape = 's32[1]{0}', space=sflag, size = 0x4, scoped, tag = 'scoped memory for tpu_custom_call.1']
    #allocation5 [shape = 'u8[294912]{0}', space=vmem, size = 0x48000, scoped, tag = 'input window, operand 1, single buffered']
    #allocation6 [shape = 's32[1]{0}', space=sflag, size = 0x4, scoped, tag = 'scoped memory for tpu_custom_call.1']
    #allocation7 [shape = 'u8[65536]{0}', space=vmem, size = 0x10000, scoped, tag = 'output window, operand 0, single buffered']
    %9 = vsyncpa [#allocation3], 0
    %10 = vsyncpa [#allocation6], 0
    %11 = vsyncpa [#allocation4], 0
    // Predicated region
    $region2: #{tpu_custom_call.1} parent=1 // pred_check
      _
    $region3: #{tpu_custom_call.1} parent=1 // pred_check_branch
      %13 = sbr.rel (0) target = $region5
    $region4: #{tpu_custom_call.1} parent=1 // pred_region
      %s15 = ssub.s32 9216, 9216
      %16 = vsyncadd [#allocation3], %s15
      %s17 = sshll.u32 [#allocation2], 4
      %s18 = int_to_ptr.vmem [resolvable:$true] %s17
      %23 = dma.hbm_to_vmem [thread:$0]  %s0, 9216, %s18, [#allocation3], 576, 576, 36
    $region5: #{tpu_custom_call.1} parent=1 // pred_fallthru
      _
    // Predicated region
    $region6: #{tpu_custom_call.1} parent=1 // pred_check
      _
    $region7: #{tpu_custom_call.1} parent=1 // pred_check_branch
      %25 = sbr.rel (0) target = $region9
    $region8: #{tpu_custom_call.1} parent=1 // pred_region
      %s27 = ssub.s32 9216, 9216
      %28 = vsyncadd [#allocation6], %s27
      %s29 = sshll.u32 [#allocation5], 4
      %s30 = int_to_ptr.vmem [resolvable:$true] %s29
      %35 = dma.hbm_to_vmem [thread:$0]  %s1, 9216, %s30, [#allocation6], 64, 64, 4
    $region9: #{tpu_custom_call.1} parent=1 // pred_fallthru
      _
    // Predicated region
    $region10: #{tpu_custom_call.1} parent=1 // pred_check
      _
    $region11: #{tpu_custom_call.1} parent=1 // pred_check_branch
      %37 = sbr.rel (0) target = $region13
    $region12: #{tpu_custom_call.1} parent=1 // pred_region
      %s38 = sadd.s32 0, 0
      %p39 = scmp.lt.s32.totalorder %s38, 0
      %s40 = scalar_select %p39, %s38, 0
      %s41 = scalar_lea.vmem %s2, %s40
      %s42 = sadd.s32 0, 0
    $region13: #{tpu_custom_call.1} parent=1 // pred_fallthru
      _
    // Predicated region
    $region14: #{tpu_custom_call.1} parent=1 // pred_check
      _
    $region15: #{tpu_custom_call.1} parent=1 // pred_check_branch
      %44 = sbr.rel (0) target = $region17
    $region16: #{tpu_custom_call.1} parent=1 // pred_region
      %s45 = sadd.s32 0, 0
      %p46 = scmp.lt.s32.totalorder %s45, 0
      %s47 = scalar_select %p46, %s45, 0
      %s48 = scalar_lea.vmem %s3, %s47
      %s49 = sadd.s32 0, 0
    $region17: #{tpu_custom_call.1} parent=1 // pred_fallthru
      _
    // Predicated region
    $region18: #{tpu_custom_call.1} parent=1 // pred_check
      _
    $region19: #{tpu_custom_call.1} parent=1 // pred_check_branch
      %51 = sbr.rel (0) target = $region21
    $region20: #{tpu_custom_call.1} parent=1 // pred_region
      %52 = dma.done [#allocation3], 9216
    $region21: #{tpu_custom_call.1} parent=1 // pred_fallthru
      _
    // Predicated region
    $region22: #{tpu_custom_call.1} parent=1 // pred_check
      _
    $region23: #{tpu_custom_call.1} parent=1 // pred_check_branch
      %54 = sbr.rel (0) target = $region25
    $region24: #{tpu_custom_call.1} parent=1 // pred_region
      %55 = dma.done [#allocation6], 9216
    $region25: #{tpu_custom_call.1} parent=1 // pred_fallthru
      _
    %s56 = sadd.s32 0, 0
    %p57 = scmp.lt.s32.totalorder %s56, 0
    %s58 = scalar_select %p57, %s56, 0
    %s59 = scalar_lea.vmem %s2, %s58
    %s60 = sadd.s32 0, 0
    %p61 = scmp.lt.s32.totalorder %s60, 0
    %s62 = scalar_select %p61, %s60, 0
    %s63 = scalar_lea.vmem %s3, %s62
    %s64 = sadd.s32 0, 0
    %p65 = scmp.lt.s32.totalorder %s64, 0
    %s66 = scalar_select %p65, %s64, 0
    %s67 = scalar_lea.vmem %s2, %s66
    %s68 = sadd.s32 0, 0
    %s69 = sadd.s32 0, 0
    %p70 = scmp.lt.s32.totalorder %s69, 0
    %s71 = scalar_select %p70, %s69, 0
    %s72 = scalar_lea.vmem %s3, %s71
    %s73 = sadd.s32 0, 0
    %s74 = sadd.s32 0, 0
    %v76 = vld [vmem:[#allocation2] sm:$0xff]
    %v77 = vld [vmem:[#allocation2 + $0x8] sm:$0xff]
    %v78 = vld [vmem:[#allocation2 + $0x10] sm:$0xff]
    %v79 = vld [vmem:[#allocation2 + $0x18] sm:$0xff]
    %v80 = vld [vmem:[#allocation2 + $0x20] sm:$0xf]
    %v81 = vld [vmem:[#allocation2 + $0x24] sm:$0xff]
    %v82 = vld [vmem:[#allocation2 + $0x2c] sm:$0xff]
    %v83 = vld [vmem:[#allocation2 + $0x34] sm:$0xff]
    %v84 = vld [vmem:[#allocation2 + $0x3c] sm:$0xff]
    %v85 = vld [vmem:[#allocation2 + $0x44] sm:$0xf]
    %v86 = vld [vmem:[#allocation2 + $0x48] sm:$0xff]
    %v87 = vld [vmem:[#allocation2 + $0x50] sm:$0xff]
    %v88 = vld [vmem:[#allocation2 + $0x58] sm:$0xff]
    %v89 = vld [vmem:[#allocation2 + $0x60] sm:$0xff]
    %v90 = vld [vmem:[#allocation2 + $0x68] sm:$0xf]
    %v91 = vld [vmem:[#allocation2 + $0x6c] sm:$0xff]
    %v92 = vld [vmem:[#allocation2 + $0x74] sm:$0xff]
    %v93 = vld [vmem:[#allocation2 + $0x7c] sm:$0xff]
    %v94 = vld [vmem:[#allocation2 + $0x84] sm:$0xff]
    %v95 = vld [vmem:[#allocation2 + $0x8c] sm:$0xf]
    %v96 = vld [vmem:[#allocation2 + $0x90] sm:$0xff]
    %v97 = vld [vmem:[#allocation2 + $0x98] sm:$0xff]
    %v98 = vld [vmem:[#allocation2 + $0xa0] sm:$0xff]
    %v99 = vld [vmem:[#allocation2 + $0xa8] sm:$0xff]
    %v100 = vld [vmem:[#allocation2 + $0xb0] sm:$0xf]
    %v101 = vld [vmem:[#allocation2 + $0xb4] sm:$0xff]
    %v102 = vld [vmem:[#allocation2 + $0xbc] sm:$0xff]
    %v103 = vld [vmem:[#allocation2 + $0xc4] sm:$0xff]
    %v104 = vld [vmem:[#allocation2 + $0xcc] sm:$0xff]
    %v105 = vld [vmem:[#allocation2 + $0xd4] sm:$0xf]
    %v106 = vld [vmem:[#allocation2 + $0xd8] sm:$0xff]
    %v107 = vld [vmem:[#allocation2 + $0xe0] sm:$0xff]
    %v108 = vld [vmem:[#allocation2 + $0xe8] sm:$0xff]
    %v109 = vld [vmem:[#allocation2 + $0xf0] sm:$0xff]
    %v110 = vld [vmem:[#allocation2 + $0xf8] sm:$0xf]
    %v111 = vld [vmem:[#allocation2 + $0xfc] sm:$0xff]
    %v112 = vld [vmem:[#allocation2 + $0x104] sm:$0xff]
    %v113 = vld [vmem:[#allocation2 + $0x10c] sm:$0xff]
    %v114 = vld [vmem:[#allocation2 + $0x114] sm:$0xff]
    %v115 = vld [vmem:[#allocation2 + $0x11c] sm:$0xf]
    %v116 = vld [vmem:[#allocation2 + $0x120] sm:$0xff]
    %v117 = vld [vmem:[#allocation2 + $0x128] sm:$0xff]
    %v118 = vld [vmem:[#allocation2 + $0x130] sm:$0xff]
    %v119 = vld [vmem:[#allocation2 + $0x138] sm:$0xff]
    %v120 = vld [vmem:[#allocation2 + $0x140] sm:$0xf]
    %v121 = vld [vmem:[#allocation2 + $0x144] sm:$0xff]
    %v122 = vld [vmem:[#allocation2 + $0x14c] sm:$0xff]
    %v123 = vld [vmem:[#allocation2 + $0x154] sm:$0xff]
    %v124 = vld [vmem:[#allocation2 + $0x15c] sm:$0xff]
    %v125 = vld [vmem:[#allocation2 + $0x164] sm:$0xf]
    %v126 = vld [vmem:[#allocation2 + $0x168] sm:$0xff]
    %v127 = vld [vmem:[#allocation2 + $0x170] sm:$0xff]
    %v128 = vld [vmem:[#allocation2 + $0x178] sm:$0xff]
    %v129 = vld [vmem:[#allocation2 + $0x180] sm:$0xff]
    %v130 = vld [vmem:[#allocation2 + $0x188] sm:$0xf]
    %v131 = vld [vmem:[#allocation2 + $0x18c] sm:$0xff]
    %v132 = vld [vmem:[#allocation2 + $0x194] sm:$0xff]
    %v133 = vld [vmem:[#allocation2 + $0x19c] sm:$0xff]
    %v134 = vld [vmem:[#allocation2 + $0x1a4] sm:$0xff]
    %v135 = vld [vmem:[#allocation2 + $0x1ac] sm:$0xf]
    %v136 = vld [vmem:[#allocation2 + $0x1b0] sm:$0xff]
    %v137 = vld [vmem:[#allocation2 + $0x1b8] sm:$0xff]
    %v138 = vld [vmem:[#allocation2 + $0x1c0] sm:$0xff]
    %v139 = vld [vmem:[#allocation2 + $0x1c8] sm:$0xff]
    %v140 = vld [vmem:[#allocation2 + $0x1d0] sm:$0xf]
    %v141 = vld [vmem:[#allocation2 + $0x1d4] sm:$0xff]
    %v142 = vld [vmem:[#allocation2 + $0x1dc] sm:$0xff]
    %v143 = vld [vmem:[#allocation2 + $0x1e4] sm:$0xff]
    %v144 = vld [vmem:[#allocation2 + $0x1ec] sm:$0xff]
    %v145 = vld [vmem:[#allocation2 + $0x1f4] sm:$0xf]
    %v146 = vld [vmem:[#allocation2 + $0x1f8] sm:$0xff]
    %v147 = vld [vmem:[#allocation2 + $0x200] sm:$0xff]
    %v148 = vld [vmem:[#allocation2 + $0x208] sm:$0xff]
    %v149 = vld [vmem:[#allocation2 + $0x210] sm:$0xff]
    %v150 = vld [vmem:[#allocation2 + $0x218] sm:$0xf]
    %v151 = vld [vmem:[#allocation2 + $0x21c] sm:$0xff]
    %v152 = vld [vmem:[#allocation2 + $0x224] sm:$0xff]
    %v153 = vld [vmem:[#allocation2 + $0x22c] sm:$0xff]
    %v154 = vld [vmem:[#allocation2 + $0x234] sm:$0xff]
    %v155 = vld [vmem:[#allocation2 + $0x23c] sm:$0xf]
    %v156 = vld [vmem:[#allocation5] sm:$0xf]
    %v157 = vld [vmem:[#allocation5 + $0x4] sm:$0xf]
    %v158 = vld [vmem:[#allocation5 + $0x8] sm:$0xf]
    %v159 = vld [vmem:[#allocation5 + $0xc] sm:$0xf]
    %v160 = vld [vmem:[#allocation5 + $0x10] sm:$0xf]
    %v161 = vld [vmem:[#allocation5 + $0x14] sm:$0xf]
    %v162 = vld [vmem:[#allocation5 + $0x18] sm:$0xf]
    %v163 = vld [vmem:[#allocation5 + $0x1c] sm:$0xf]
    %v164 = vld [vmem:[#allocation5 + $0x20] sm:$0xf]
    %v165 = vld [vmem:[#allocation5 + $0x24] sm:$0xf]
    %v166 = vld [vmem:[#allocation5 + $0x28] sm:$0xf]
    %v167 = vld [vmem:[#allocation5 + $0x2c] sm:$0xf]
    %v168 = vld [vmem:[#allocation5 + $0x30] sm:$0xf]
    %v169 = vld [vmem:[#allocation5 + $0x34] sm:$0xf]
    %v170 = vld [vmem:[#allocation5 + $0x38] sm:$0xf]
    %v171 = vld [vmem:[#allocation5 + $0x3c] sm:$0xf]
    %v172 = vld [vmem:[#allocation5 + $0x40] sm:$0xf]
    %v173 = vld [vmem:[#allocation5 + $0x44] sm:$0xf]
    %v174 = vld [vmem:[#allocation5 + $0x48] sm:$0xf]
    %v175 = vld [vmem:[#allocation5 + $0x4c] sm:$0xf]
    %v176 = vld [vmem:[#allocation5 + $0x50] sm:$0xf]
    %v177 = vld [vmem:[#allocation5 + $0x54] sm:$0xf]
    %v178 = vld [vmem:[#allocation5 + $0x58] sm:$0xf]
    %v179 = vld [vmem:[#allocation5 + $0x5c] sm:$0xf]
    %v180 = vld [vmem:[#allocation5 + $0x60] sm:$0xf]
    %v181 = vld [vmem:[#allocation5 + $0x64] sm:$0xf]
    %v182 = vld [vmem:[#allocation5 + $0x68] sm:$0xf]
    %v183 = vld [vmem:[#allocation5 + $0x6c] sm:$0xf]
    %v184 = vld [vmem:[#allocation5 + $0x70] sm:$0xf]
    %v185 = vld [vmem:[#allocation5 + $0x74] sm:$0xf]
    %v186 = vld [vmem:[#allocation5 + $0x78] sm:$0xf]
    %v187 = vld [vmem:[#allocation5 + $0x7c] sm:$0xf]
    %v188 = vld [vmem:[#allocation5 + $0x80] sm:$0xf]
    %v189 = vld [vmem:[#allocation5 + $0x84] sm:$0xf]
    %v190 = vld [vmem:[#allocation5 + $0x88] sm:$0xf]
    %v191 = vld [vmem:[#allocation5 + $0x8c] sm:$0xf]
    %v192 = vld [vmem:[#allocation5 + $0x90] sm:$0xf]
    %v193 = vld [vmem:[#allocation5 + $0x94] sm:$0xf]
    %v194 = vld [vmem:[#allocation5 + $0x98] sm:$0xf]
    %v195 = vld [vmem:[#allocation5 + $0x9c] sm:$0xf]
    %v196 = vld [vmem:[#allocation5 + $0xa0] sm:$0xf]
    %v197 = vld [vmem:[#allocation5 + $0xa4] sm:$0xf]
    %v198 = vld [vmem:[#allocation5 + $0xa8] sm:$0xf]
    %v199 = vld [vmem:[#allocation5 + $0xac] sm:$0xf]
    %v200 = vld [vmem:[#allocation5 + $0xb0] sm:$0xf]
    %v201 = vld [vmem:[#allocation5 + $0xb4] sm:$0xf]
    %v202 = vld [vmem:[#allocation5 + $0xb8] sm:$0xf]
    %v203 = vld [vmem:[#allocation5 + $0xbc] sm:$0xf]
    %v204 = vld [vmem:[#allocation5 + $0xc0] sm:$0xf]
    %v205 = vld [vmem:[#allocation5 + $0xc4] sm:$0xf]
    %v206 = vld [vmem:[#allocation5 + $0xc8] sm:$0xf]
    %v207 = vld [vmem:[#allocation5 + $0xcc] sm:$0xf]
    %v208 = vld [vmem:[#allocation5 + $0xd0] sm:$0xf]
    %v209 = vld [vmem:[#allocation5 + $0xd4] sm:$0xf]
    %v210 = vld [vmem:[#allocation5 + $0xd8] sm:$0xf]
    %v211 = vld [vmem:[#allocation5 + $0xdc] sm:$0xf]
    %v212 = vld [vmem:[#allocation5 + $0xe0] sm:$0xf]
    %v213 = vld [vmem:[#allocation5 + $0xe4] sm:$0xf]
    %v214 = vld [vmem:[#allocation5 + $0xe8] sm:$0xf]
    %v215 = vld [vmem:[#allocation5 + $0xec] sm:$0xf]
    %v216 = vld [vmem:[#allocation5 + $0xf0] sm:$0xf]
    %v217 = vld [vmem:[#allocation5 + $0xf4] sm:$0xf]
    %v218 = vld [vmem:[#allocation5 + $0xf8] sm:$0xf]
    %v219 = vld [vmem:[#allocation5 + $0xfc] sm:$0xf]
    %v220 = vld [vmem:[#allocation5 + $0x100] sm:$0xf]
    %v221 = vld [vmem:[#allocation5 + $0x104] sm:$0xf]
    %v222 = vld [vmem:[#allocation5 + $0x108] sm:$0xf]
    %v223 = vld [vmem:[#allocation5 + $0x10c] sm:$0xf]
    %v224 = vld [vmem:[#allocation5 + $0x110] sm:$0xf]
    %v225 = vld [vmem:[#allocation5 + $0x114] sm:$0xf]
    %v226 = vld [vmem:[#allocation5 + $0x118] sm:$0xf]
    %v227 = vld [vmem:[#allocation5 + $0x11c] sm:$0xf]
    %v228 = vld [vmem:[#allocation5 + $0x120] sm:$0xf]
    %v229 = vld [vmem:[#allocation5 + $0x124] sm:$0xf]
    %v230 = vld [vmem:[#allocation5 + $0x128] sm:$0xf]
    %v231 = vld [vmem:[#allocation5 + $0x12c] sm:$0xf]
    %v232 = vld [vmem:[#allocation5 + $0x130] sm:$0xf]
    %v233 = vld [vmem:[#allocation5 + $0x134] sm:$0xf]
    %v234 = vld [vmem:[#allocation5 + $0x138] sm:$0xf]
    %v235 = vld [vmem:[#allocation5 + $0x13c] sm:$0xf]
    %v236 = vld [vmem:[#allocation5 + $0x140] sm:$0xf]
    %v237 = vld [vmem:[#allocation5 + $0x144] sm:$0xf]
    %v238 = vld [vmem:[#allocation5 + $0x148] sm:$0xf]
    %v239 = vld [vmem:[#allocation5 + $0x14c] sm:$0xf]
    %v240 = vld [vmem:[#allocation5 + $0x150] sm:$0xf]
    %v241 = vld [vmem:[#allocation5 + $0x154] sm:$0xf]
    %v242 = vld [vmem:[#allocation5 + $0x158] sm:$0xf]
    %v243 = vld [vmem:[#allocation5 + $0x15c] sm:$0xf]
    %v244 = vld [vmem:[#allocation5 + $0x160] sm:$0xf]
    %v245 = vld [vmem:[#allocation5 + $0x164] sm:$0xf]
    %v246 = vld [vmem:[#allocation5 + $0x168] sm:$0xf]
    %v247 = vld [vmem:[#allocation5 + $0x16c] sm:$0xf]
    %v248 = vld [vmem:[#allocation5 + $0x170] sm:$0xf]
    %v249 = vld [vmem:[#allocation5 + $0x174] sm:$0xf]
    %v250 = vld [vmem:[#allocation5 + $0x178] sm:$0xf]
    %v251 = vld [vmem:[#allocation5 + $0x17c] sm:$0xf]
    %v252 = vld [vmem:[#allocation5 + $0x180] sm:$0xf]
    %v253 = vld [vmem:[#allocation5 + $0x184] sm:$0xf]
    %v254 = vld [vmem:[#allocation5 + $0x188] sm:$0xf]
    %v255 = vld [vmem:[#allocation5 + $0x18c] sm:$0xf]
    %v256 = vld [vmem:[#allocation5 + $0x190] sm:$0xf]
    %v257 = vld [vmem:[#allocation5 + $0x194] sm:$0xf]
    %v258 = vld [vmem:[#allocation5 + $0x198] sm:$0xf]
    %v259 = vld [vmem:[#allocation5 + $0x19c] sm:$0xf]
    %v260 = vld [vmem:[#allocation5 + $0x1a0] sm:$0xf]
    %v261 = vld [vmem:[#allocation5 + $0x1a4] sm:$0xf]
    %v262 = vld [vmem:[#allocation5 + $0x1a8] sm:$0xf]
    %v263 = vld [vmem:[#allocation5 + $0x1ac] sm:$0xf]
    %v264 = vld [vmem:[#allocation5 + $0x1b0] sm:$0xf]
    %v265 = vld [vmem:[#allocation5 + $0x1b4] sm:$0xf]
    %v266 = vld [vmem:[#allocation5 + $0x1b8] sm:$0xf]
    %v267 = vld [vmem:[#allocation5 + $0x1bc] sm:$0xf]
    %v268 = vld [vmem:[#allocation5 + $0x1c0] sm:$0xf]
    %v269 = vld [vmem:[#allocation5 + $0x1c4] sm:$0xf]
    %v270 = vld [vmem:[#allocation5 + $0x1c8] sm:$0xf]
    %v271 = vld [vmem:[#allocation5 + $0x1cc] sm:$0xf]
    %v272 = vld [vmem:[#allocation5 + $0x1d0] sm:$0xf]
    %v273 = vld [vmem:[#allocation5 + $0x1d4] sm:$0xf]
    %v274 = vld [vmem:[#allocation5 + $0x1d8] sm:$0xf]
    %v275 = vld [vmem:[#allocation5 + $0x1dc] sm:$0xf]
    %v276 = vld [vmem:[#allocation5 + $0x1e0] sm:$0xf]
    %v277 = vld [vmem:[#allocation5 + $0x1e4] sm:$0xf]
    %v278 = vld [vmem:[#allocation5 + $0x1e8] sm:$0xf]
    %v279 = vld [vmem:[#allocation5 + $0x1ec] sm:$0xf]
    %v280 = vld [vmem:[#allocation5 + $0x1f0] sm:$0xf]
    %v281 = vld [vmem:[#allocation5 + $0x1f4] sm:$0xf]
    %v282 = vld [vmem:[#allocation5 + $0x1f8] sm:$0xf]
    %v283 = vld [vmem:[#allocation5 + $0x1fc] sm:$0xf]
    %v284 = vld [vmem:[#allocation5 + $0x200] sm:$0xf]
    %v285 = vld [vmem:[#allocation5 + $0x204] sm:$0xf]
    %v286 = vld [vmem:[#allocation5 + $0x208] sm:$0xf]
    %v287 = vld [vmem:[#allocation5 + $0x20c] sm:$0xf]
    %v288 = vld [vmem:[#allocation5 + $0x210] sm:$0xf]
    %v289 = vld [vmem:[#allocation5 + $0x214] sm:$0xf]
    %v290 = vld [vmem:[#allocation5 + $0x218] sm:$0xf]
    %v291 = vld [vmem:[#allocation5 + $0x21c] sm:$0xf]
    %v292 = vld [vmem:[#allocation5 + $0x220] sm:$0xf]
    %v293 = vld [vmem:[#allocation5 + $0x224] sm:$0xf]
    %v294 = vld [vmem:[#allocation5 + $0x228] sm:$0xf]
    %v295 = vld [vmem:[#allocation5 + $0x22c] sm:$0xf]
    %v296 = vld [vmem:[#allocation5 + $0x230] sm:$0xf]
    %v297 = vld [vmem:[#allocation5 + $0x234] sm:$0xf]
    %v298 = vld [vmem:[#allocation5 + $0x238] sm:$0xf]
    %v299 = vld [vmem:[#allocation5 + $0x23c] sm:$0xf]
    %v380 = vunpack.c.l.b16 %v76
    %v381 = vunpack.c.h.b16 %v76
    %v382 = vunpack.c.l.b16 %v77
    %v383 = vunpack.c.h.b16 %v77
    %v384 = vunpack.c.l.b16 %v78
    %v385 = vunpack.c.h.b16 %v78
    %v386 = vunpack.c.l.b16 %v79
    %v387 = vunpack.c.h.b16 %v79
    %v388 = vunpack.c.l.b16 %v80
    %v389 = vunpack.c.l.b16 %v81
    %v390 = vunpack.c.h.b16 %v81
    %v391 = vunpack.c.l.b16 %v82
    %v392 = vunpack.c.h.b16 %v82
    %v393 = vunpack.c.l.b16 %v83
    %v394 = vunpack.c.h.b16 %v83
    %v395 = vunpack.c.l.b16 %v84
    %v396 = vunpack.c.h.b16 %v84
    %v397 = vunpack.c.l.b16 %v85
    %v398 = vunpack.c.l.b16 %v86
    %v399 = vunpack.c.h.b16 %v86
    %v400 = vunpack.c.l.b16 %v87
    %v401 = vunpack.c.h.b16 %v87
    %v402 = vunpack.c.l.b16 %v88
    %v403 = vunpack.c.h.b16 %v88
    %v404 = vunpack.c.l.b16 %v89
    %v405 = vunpack.c.h.b16 %v89
    %v406 = vunpack.c.l.b16 %v90
    %v407 = vunpack.c.l.b16 %v91
    %v408 = vunpack.c.h.b16 %v91
    %v409 = vunpack.c.l.b16 %v92
    %v410 = vunpack.c.h.b16 %v92
    %v411 = vunpack.c.l.b16 %v93
    %v412 = vunpack.c.h.b16 %v93
    %v413 = vunpack.c.l.b16 %v94
    %v414 = vunpack.c.h.b16 %v94
    %v415 = vunpack.c.l.b16 %v95
    %v416 = vunpack.c.l.b16 %v96
    %v417 = vunpack.c.h.b16 %v96
    %v418 = vunpack.c.l.b16 %v97
    %v419 = vunpack.c.h.b16 %v97
    %v420 = vunpack.c.l.b16 %v98
    %v421 = vunpack.c.h.b16 %v98
    %v422 = vunpack.c.l.b16 %v99
    %v423 = vunpack.c.h.b16 %v99
    %v424 = vunpack.c.l.b16 %v100
    %v425 = vunpack.c.l.b16 %v101
    %v426 = vunpack.c.h.b16 %v101
    %v427 = vunpack.c.l.b16 %v102
    %v428 = vunpack.c.h.b16 %v102
    %v429 = vunpack.c.l.b16 %v103
    %v430 = vunpack.c.h.b16 %v103
    %v431 = vunpack.c.l.b16 %v104
    %v432 = vunpack.c.h.b16 %v104
    %v433 = vunpack.c.l.b16 %v105
    %v434 = vunpack.c.l.b16 %v106
    %v435 = vunpack.c.h.b16 %v106
    %v436 = vunpack.c.l.b16 %v107
    %v437 = vunpack.c.h.b16 %v107
    %v438 = vunpack.c.l.b16 %v108
    %v439 = vunpack.c.h.b16 %v108
    %v440 = vunpack.c.l.b16 %v109
    %v441 = vunpack.c.h.b16 %v109
    %v442 = vunpack.c.l.b16 %v110
    %v443 = vunpack.c.l.b16 %v111
    %v444 = vunpack.c.h.b16 %v111
    %v445 = vunpack.c.l.b16 %v112
    %v446 = vunpack.c.h.b16 %v112
    %v447 = vunpack.c.l.b16 %v113
    %v448 = vunpack.c.h.b16 %v113
    %v449 = vunpack.c.l.b16 %v114
    %v450 = vunpack.c.h.b16 %v114
    %v451 = vunpack.c.l.b16 %v115
    %v452 = vunpack.c.l.b16 %v116
    %v453 = vunpack.c.h.b16 %v116
    %v454 = vunpack.c.l.b16 %v117
    %v455 = vunpack.c.h.b16 %v117
    %v456 = vunpack.c.l.b16 %v118
    %v457 = vunpack.c.h.b16 %v118
    %v458 = vunpack.c.l.b16 %v119
    %v459 = vunpack.c.h.b16 %v119
    %v460 = vunpack.c.l.b16 %v120
    %v461 = vunpack.c.l.b16 %v121
    %v462 = vunpack.c.h.b16 %v121
    %v463 = vunpack.c.l.b16 %v122
    %v464 = vunpack.c.h.b16 %v122
    %v465 = vunpack.c.l.b16 %v123
    %v466 = vunpack.c.h.b16 %v123
    %v467 = vunpack.c.l.b16 %v124
    %v468 = vunpack.c.h.b16 %v124
    %v469 = vunpack.c.l.b16 %v125
    %v470 = vunpack.c.l.b16 %v126
    %v471 = vunpack.c.h.b16 %v126
    %v472 = vunpack.c.l.b16 %v127
    %v473 = vunpack.c.h.b16 %v127
    %v474 = vunpack.c.l.b16 %v128
    %v475 = vunpack.c.h.b16 %v128
    %v476 = vunpack.c.l.b16 %v129
    %v477 = vunpack.c.h.b16 %v129
    %v478 = vunpack.c.l.b16 %v130
    %v479 = vunpack.c.l.b16 %v131
    %v480 = vunpack.c.h.b16 %v131
    %v481 = vunpack.c.l.b16 %v132
    %v482 = vunpack.c.h.b16 %v132
    %v483 = vunpack.c.l.b16 %v133
    %v484 = vunpack.c.h.b16 %v133
    %v485 = vunpack.c.l.b16 %v134
    %v486 = vunpack.c.h.b16 %v134
    %v487 = vunpack.c.l.b16 %v135
    %v488 = vunpack.c.l.b16 %v136
    %v489 = vunpack.c.h.b16 %v136
    %v490 = vunpack.c.l.b16 %v137
    %v491 = vunpack.c.h.b16 %v137
    %v492 = vunpack.c.l.b16 %v138
    %v493 = vunpack.c.h.b16 %v138
    %v494 = vunpack.c.l.b16 %v139
    %v495 = vunpack.c.h.b16 %v139
    %v496 = vunpack.c.l.b16 %v140
    %v497 = vunpack.c.l.b16 %v141
    %v498 = vunpack.c.h.b16 %v141
    %v499 = vunpack.c.l.b16 %v142
    %v500 = vunpack.c.h.b16 %v142
    %v501 = vunpack.c.l.b16 %v143
    %v502 = vunpack.c.h.b16 %v143
    %v503 = vunpack.c.l.b16 %v144
    %v504 = vunpack.c.h.b16 %v144
    %v505 = vunpack.c.l.b16 %v145
    %v506 = vunpack.c.l.b16 %v146
    %v507 = vunpack.c.h.b16 %v146
    %v508 = vunpack.c.l.b16 %v147
    %v509 = vunpack.c.h.b16 %v147
    %v510 = vunpack.c.l.b16 %v148
    %v511 = vunpack.c.h.b16 %v148
    %v512 = vunpack.c.l.b16 %v149
    %v513 = vunpack.c.h.b16 %v149
    %v514 = vunpack.c.l.b16 %v150
    %v515 = vunpack.c.l.b16 %v151
    %v516 = vunpack.c.h.b16 %v151
    %v517 = vunpack.c.l.b16 %v152
    %v518 = vunpack.c.h.b16 %v152
    %v519 = vunpack.c.l.b16 %v153
    %v520 = vunpack.c.h.b16 %v153
    %v521 = vunpack.c.l.b16 %v154
    %v522 = vunpack.c.h.b16 %v154
    %v523 = vunpack.c.l.b16 %v155
    %v524 = vpack.c.b16 %v389, %v380
    %v525 = vpack.c.b16 %v390, %v381
    %v526 = vpack.c.b16 %v391, %v382
    %v527 = vpack.c.b16 %v392, %v383
    %v528 = vpack.c.b16 %v393, %v384
    %v529 = vpack.c.b16 %v394, %v385
    %v530 = vpack.c.b16 %v395, %v386
    %v531 = vpack.c.b16 %v396, %v387
    %v532 = vpack.c.b16 %v397, %v388
    %v533 = vpack.c.b16 %v407, %v398
    %v534 = vpack.c.b16 %v408, %v399
    %v535 = vpack.c.b16 %v409, %v400
    %v536 = vpack.c.b16 %v410, %v401
    %v537 = vpack.c.b16 %v411, %v402
    %v538 = vpack.c.b16 %v412, %v403
    %v539 = vpack.c.b16 %v413, %v404
    %v540 = vpack.c.b16 %v414, %v405
    %v541 = vpack.c.b16 %v415, %v406
    %v542 = vpack.c.b16 %v425, %v416
    %v543 = vpack.c.b16 %v426, %v417
    %v544 = vpack.c.b16 %v427, %v418
    %v545 = vpack.c.b16 %v428, %v419
    %v546 = vpack.c.b16 %v429, %v420
    %v547 = vpack.c.b16 %v430, %v421
    %v548 = vpack.c.b16 %v431, %v422
    %v549 = vpack.c.b16 %v432, %v423
    %v550 = vpack.c.b16 %v433, %v424
    %v551 = vpack.c.b16 %v443, %v434
    %v552 = vpack.c.b16 %v444, %v435
    %v553 = vpack.c.b16 %v445, %v436
    %v554 = vpack.c.b16 %v446, %v437
    %v555 = vpack.c.b16 %v447, %v438
    %v556 = vpack.c.b16 %v448, %v439
    %v557 = vpack.c.b16 %v449, %v440
    %v558 = vpack.c.b16 %v450, %v441
    %v559 = vpack.c.b16 %v451, %v442
    %v560 = vpack.c.b16 %v461, %v452
    %v561 = vpack.c.b16 %v462, %v453
    %v562 = vpack.c.b16 %v463, %v454
    %v563 = vpack.c.b16 %v464, %v455
    %v564 = vpack.c.b16 %v465, %v456
    %v565 = vpack.c.b16 %v466, %v457
    %v566 = vpack.c.b16 %v467, %v458
    %v567 = vpack.c.b16 %v468, %v459
    %v568 = vpack.c.b16 %v469, %v460
    %v569 = vpack.c.b16 %v479, %v470
    %v570 = vpack.c.b16 %v480, %v471
    %v571 = vpack.c.b16 %v481, %v472
    %v572 = vpack.c.b16 %v482, %v473
    %v573 = vpack.c.b16 %v483, %v474
    %v574 = vpack.c.b16 %v484, %v475
    %v575 = vpack.c.b16 %v485, %v476
    %v576 = vpack.c.b16 %v486, %v477
    %v577 = vpack.c.b16 %v487, %v478
    %v578 = vpack.c.b16 %v497, %v488
    %v579 = vpack.c.b16 %v498, %v489
    %v580 = vpack.c.b16 %v499, %v490
    %v581 = vpack.c.b16 %v500, %v491
    %v582 = vpack.c.b16 %v501, %v492
    %v583 = vpack.c.b16 %v502, %v493
    %v584 = vpack.c.b16 %v503, %v494
    %v585 = vpack.c.b16 %v504, %v495
    %v586 = vpack.c.b16 %v505, %v496
    %v587 = vpack.c.b16 %v515, %v506
    %v588 = vpack.c.b16 %v516, %v507
    %v589 = vpack.c.b16 %v517, %v508
    %v590 = vpack.c.b16 %v518, %v509
    %v591 = vpack.c.b16 %v519, %v510
    %v592 = vpack.c.b16 %v520, %v511
    %v593 = vpack.c.b16 %v521, %v512
    %v594 = vpack.c.b16 %v522, %v513
    %v595 = vpack.c.b16 %v523, %v514
    %v812 = vunpack.c.l.b16 %v156
    %v813 = vunpack.c.l.b16 %v157
    %v814 = vunpack.c.l.b16 %v158
    %v815 = vunpack.c.l.b16 %v159
    %v816 = vunpack.c.l.b16 %v160
    %v817 = vunpack.c.l.b16 %v161
    %v818 = vunpack.c.l.b16 %v162
    %v819 = vunpack.c.l.b16 %v163
    %v820 = vunpack.c.l.b16 %v164
    %v821 = vunpack.c.l.b16 %v165
    %v822 = vunpack.c.l.b16 %v166
    %v823 = vunpack.c.l.b16 %v167
    %v824 = vunpack.c.l.b16 %v168
    %v825 = vunpack.c.l.b16 %v169
    %v826 = vunpack.c.l.b16 %v170
    %v827 = vunpack.c.l.b16 %v171
    %v828 = vunpack.c.l.b16 %v172
    %v829 = vunpack.c.l.b16 %v173
    %v830 = vunpack.c.l.b16 %v174
    %v831 = vunpack.c.l.b16 %v175
    %v832 = vunpack.c.l.b16 %v176
    %v833 = vunpack.c.l.b16 %v177
    %v834 = vunpack.c.l.b16 %v178
    %v835 = vunpack.c.l.b16 %v179
    %v836 = vunpack.c.l.b16 %v180
    %v837 = vunpack.c.l.b16 %v181
    %v838 = vunpack.c.l.b16 %v182
    %v839 = vunpack.c.l.b16 %v183
    %v840 = vunpack.c.l.b16 %v184
    %v841 = vunpack.c.l.b16 %v185
    %v842 = vunpack.c.l.b16 %v186
    %v843 = vunpack.c.l.b16 %v187
    %v844 = vunpack.c.l.b16 %v188
    %v845 = vunpack.c.l.b16 %v189
    %v846 = vunpack.c.l.b16 %v190
    %v847 = vunpack.c.l.b16 %v191
    %v848 = vunpack.c.l.b16 %v192
    %v849 = vunpack.c.l.b16 %v193
    %v850 = vunpack.c.l.b16 %v194
    %v851 = vunpack.c.l.b16 %v195
    %v852 = vunpack.c.l.b16 %v196
    %v853 = vunpack.c.l.b16 %v197
    %v854 = vunpack.c.l.b16 %v198
    %v855 = vunpack.c.l.b16 %v199
    %v856 = vunpack.c.l.b16 %v200
    %v857 = vunpack.c.l.b16 %v201
    %v858 = vunpack.c.l.b16 %v202
    %v859 = vunpack.c.l.b16 %v203
    %v860 = vunpack.c.l.b16 %v204
    %v861 = vunpack.c.l.b16 %v205
    %v862 = vunpack.c.l.b16 %v206
    %v863 = vunpack.c.l.b16 %v207
    %v864 = vunpack.c.l.b16 %v208
    %v865 = vunpack.c.l.b16 %v209
    %v866 = vunpack.c.l.b16 %v210
    %v867 = vunpack.c.l.b16 %v211
    %v868 = vunpack.c.l.b16 %v212
    %v869 = vunpack.c.l.b16 %v213
    %v870 = vunpack.c.l.b16 %v214
    %v871 = vunpack.c.l.b16 %v215
    %v872 = vunpack.c.l.b16 %v216
    %v873 = vunpack.c.l.b16 %v217
    %v874 = vunpack.c.l.b16 %v218
    %v875 = vunpack.c.l.b16 %v219
    %v876 = vunpack.c.l.b16 %v220
    %v877 = vunpack.c.l.b16 %v221
    %v878 = vunpack.c.l.b16 %v222
    %v879 = vunpack.c.l.b16 %v223
    %v880 = vunpack.c.l.b16 %v224
    %v881 = vunpack.c.l.b16 %v225
    %v882 = vunpack.c.l.b16 %v226
    %v883 = vunpack.c.l.b16 %v227
    %v884 = vunpack.c.l.b16 %v228
    %v885 = vunpack.c.l.b16 %v229
    %v886 = vunpack.c.l.b16 %v230
    %v887 = vunpack.c.l.b16 %v231
    %v888 = vunpack.c.l.b16 %v232
    %v889 = vunpack.c.l.b16 %v233
    %v890 = vunpack.c.l.b16 %v234
    %v891 = vunpack.c.l.b16 %v235
    %v892 = vunpack.c.l.b16 %v236
    %v893 = vunpack.c.l.b16 %v237
    %v894 = vunpack.c.l.b16 %v238
    %v895 = vunpack.c.l.b16 %v239
    %v896 = vunpack.c.l.b16 %v240
    %v897 = vunpack.c.l.b16 %v241
    %v898 = vunpack.c.l.b16 %v242
    %v899 = vunpack.c.l.b16 %v243
    %v900 = vunpack.c.l.b16 %v244
    %v901 = vunpack.c.l.b16 %v245
    %v902 = vunpack.c.l.b16 %v246
    %v903 = vunpack.c.l.b16 %v247
    %v904 = vunpack.c.l.b16 %v248
    %v905 = vunpack.c.l.b16 %v249
    %v906 = vunpack.c.l.b16 %v250
    %v907 = vunpack.c.l.b16 %v251
    %v908 = vunpack.c.l.b16 %v252
    %v909 = vunpack.c.l.b16 %v253
    %v910 = vunpack.c.l.b16 %v254
    %v911 = vunpack.c.l.b16 %v255
    %v912 = vunpack.c.l.b16 %v256
    %v913 = vunpack.c.l.b16 %v257
    %v914 = vunpack.c.l.b16 %v258
    %v915 = vunpack.c.l.b16 %v259
    %v916 = vunpack.c.l.b16 %v260
    %v917 = vunpack.c.l.b16 %v261
    %v918 = vunpack.c.l.b16 %v262
    %v919 = vunpack.c.l.b16 %v263
    %v920 = vunpack.c.l.b16 %v264
    %v921 = vunpack.c.l.b16 %v265
    %v922 = vunpack.c.l.b16 %v266
    %v923 = vunpack.c.l.b16 %v267
    %v924 = vunpack.c.l.b16 %v268
    %v925 = vunpack.c.l.b16 %v269
    %v926 = vunpack.c.l.b16 %v270
    %v927 = vunpack.c.l.b16 %v271
    %v928 = vunpack.c.l.b16 %v272
    %v929 = vunpack.c.l.b16 %v273
    %v930 = vunpack.c.l.b16 %v274
    %v931 = vunpack.c.l.b16 %v275
    %v932 = vunpack.c.l.b16 %v276
    %v933 = vunpack.c.l.b16 %v277
    %v934 = vunpack.c.l.b16 %v278
    %v935 = vunpack.c.l.b16 %v279
    %v936 = vunpack.c.l.b16 %v280
    %v937 = vunpack.c.l.b16 %v281
    %v938 = vunpack.c.l.b16 %v282
    %v939 = vunpack.c.l.b16 %v283
    %v940 = vunpack.c.l.b16 %v284
    %v941 = vunpack.c.l.b16 %v285
    %v942 = vunpack.c.l.b16 %v286
    %v943 = vunpack.c.l.b16 %v287
    %v944 = vunpack.c.l.b16 %v288
    %v945 = vunpack.c.l.b16 %v289
    %v946 = vunpack.c.l.b16 %v290
    %v947 = vunpack.c.l.b16 %v291
    %v948 = vunpack.c.l.b16 %v292
    %v949 = vunpack.c.l.b16 %v293
    %v950 = vunpack.c.l.b16 %v294
    %v951 = vunpack.c.l.b16 %v295
    %v952 = vunpack.c.l.b16 %v296
    %v953 = vunpack.c.l.b16 %v297
    %v954 = vunpack.c.l.b16 %v298
    %v955 = vunpack.c.l.b16 %v299
    %v956 = vpack.c.b16 %v813, %v812
    %v957 = vpack.c.b16 %v815, %v814
    %v958 = vpack.c.b16 %v817, %v816
    %v959 = vpack.c.b16 %v819, %v818
    %v960 = vpack.c.b16 %v821, %v820
    %v961 = vpack.c.b16 %v823, %v822
    %v962 = vpack.c.b16 %v825, %v824
    %v963 = vpack.c.b16 %v827, %v826
    %v964 = vpack.c.b16 %v829, %v828
    %v965 = vpack.c.b16 %v831, %v830
    %v966 = vpack.c.b16 %v833, %v832
    %v967 = vpack.c.b16 %v835, %v834
    %v968 = vpack.c.b16 %v837, %v836
    %v969 = vpack.c.b16 %v839, %v838
    %v970 = vpack.c.b16 %v841, %v840
    %v971 = vpack.c.b16 %v843, %v842
    %v972 = vpack.c.b16 %v845, %v844
    %v973 = vpack.c.b16 %v847, %v846
    %v974 = vpack.c.b16 %v849, %v848
    %v975 = vpack.c.b16 %v851, %v850
    %v976 = vpack.c.b16 %v853, %v852
    %v977 = vpack.c.b16 %v855, %v854
    %v978 = vpack.c.b16 %v857, %v856
    %v979 = vpack.c.b16 %v859, %v858
    %v980 = vpack.c.b16 %v861, %v860
    %v981 = vpack.c.b16 %v863, %v862
    %v982 = vpack.c.b16 %v865, %v864
    %v983 = vpack.c.b16 %v867, %v866
    %v984 = vpack.c.b16 %v869, %v868
    %v985 = vpack.c.b16 %v871, %v870
    %v986 = vpack.c.b16 %v873, %v872
    %v987 = vpack.c.b16 %v875, %v874
    %v988 = vpack.c.b16 %v877, %v876
    %v989 = vpack.c.b16 %v879, %v878
    %v990 = vpack.c.b16 %v881, %v880
    %v991 = vpack.c.b16 %v883, %v882
    %v992 = vpack.c.b16 %v885, %v884
    %v993 = vpack.c.b16 %v887, %v886
    %v994 = vpack.c.b16 %v889, %v888
    %v995 = vpack.c.b16 %v891, %v890
    %v996 = vpack.c.b16 %v893, %v892
    %v997 = vpack.c.b16 %v895, %v894
    %v998 = vpack.c.b16 %v897, %v896
    %v999 = vpack.c.b16 %v899, %v898
    %v1000 = vpack.c.b16 %v901, %v900
    %v1001 = vpack.c.b16 %v903, %v902
    %v1002 = vpack.c.b16 %v905, %v904
    %v1003 = vpack.c.b16 %v907, %v906
    %v1004 = vpack.c.b16 %v909, %v908
    %v1005 = vpack.c.b16 %v911, %v910
    %v1006 = vpack.c.b16 %v913, %v912
    %v1007 = vpack.c.b16 %v915, %v914
    %v1008 = vpack.c.b16 %v917, %v916
    %v1009 = vpack.c.b16 %v919, %v918
    %v1010 = vpack.c.b16 %v921, %v920
    %v1011 = vpack.c.b16 %v923, %v922
    %v1012 = vpack.c.b16 %v925, %v924
    %v1013 = vpack.c.b16 %v927, %v926
    %v1014 = vpack.c.b16 %v929, %v928
    %v1015 = vpack.c.b16 %v931, %v930
    %v1016 = vpack.c.b16 %v933, %v932
    %v1017 = vpack.c.b16 %v935, %v934
    %v1018 = vpack.c.b16 %v937, %v936
    %v1019 = vpack.c.b16 %v939, %v938
    %v1020 = vpack.c.b16 %v941, %v940
    %v1021 = vpack.c.b16 %v943, %v942
    %v1022 = vpack.c.b16 %v945, %v944
    %v1023 = vpack.c.b16 %v947, %v946
    %v1024 = vpack.c.b16 %v949, %v948
    %v1025 = vpack.c.b16 %v951, %v950
    %v1026 = vpack.c.b16 %v953, %v952
    %v1027 = vpack.c.b16 %v955, %v954
    %1100 = vmatprep.subr.bf16.mxu0 0
    %1101 = vmatpush1.bf16.msra.mxu0 %v956
    %1102 = vmatprep.subr.bf16.mxu0 0
    %1103 = vmatpush1.bf16.msra.mxu0 %v957
    %1104 = vmatprep.subr.bf16.mxu0 0
    %1105 = vmatpush1.bf16.msra.mxu0 %v958
    %1106 = vmatprep.subr.bf16.mxu0 0
    %1107 = vmatpush1.bf16.msra.mxu0 %v959
    %1108 = vmatprep.subr.bf16.mxu0 0
    %1109 = vmatpush1.bf16.msra.mxu0 %v960
    %1110 = vmatprep.subr.bf16.mxu0 0
    %1111 = vmatpush1.bf16.msra.mxu0 %v961
    %1112 = vmatprep.subr.bf16.mxu0 0
    %1113 = vmatpush1.bf16.msra.mxu0 %v962
    %1114 = vmatprep.subr.bf16.mxu0 0
    %1115 = vmatpush1.bf16.msra.mxu0 %v963
    %1116 = vmatprep.subr.bf16.mxu0 0
    %1117 = vmatpush1.bf16.msra.mxu0 %v964
    %1118 = vmatprep.subr.bf16.mxu0 0
    %1119 = vmatpush1.bf16.msra.mxu0 %v965
    %1120 = vmatprep.subr.bf16.mxu0 0
    %1121 = vmatpush1.bf16.msra.mxu0 %v966
    %1122 = vmatprep.subr.bf16.mxu0 0
    %1123 = vmatpush1.bf16.msra.mxu0 %v967
    %1124 = vmatprep.subr.bf16.mxu0 0
    %1125 = vmatpush1.bf16.msra.mxu0 %v968
    %1126 = vmatprep.subr.bf16.mxu0 0
    %1127 = vmatpush1.bf16.msra.mxu0 %v969
    %1128 = vmatprep.subr.bf16.mxu0 0
    %1129 = vmatpush1.bf16.msra.mxu0 %v970
    %1130 = vmatprep.subr.bf16.mxu0 0
    %1131 = vmatpush1.bf16.msra.mxu0 %v971
    %1132 = vmatprep.mubr.bf16.mxu0 %v525
    %1133 = vmatmul.mubr.bf16.gmra.mrb[0].mxu0 %v524
    %v1134 = vpop.f32.mrb[0].mxu0
    %v1135 = vadd.f32 0.0, %v1134
    %v1136 = vpop.f32.mrb[0].mxu0
    %v1137 = vpop.f32.mrb[0].mxu0
    %v1138 = vadd.f32 0.0, %v1137
    %v1139 = vpop.f32.mrb[0].mxu0
    %1140 = vmatprep.mubr.bf16.mxu0 %v534
    %1141 = vmatmul.mubr.bf16.gmra.mrb[0].mxu0 %v533
    %v1142 = vpop.f32.mrb[0].mxu0
    %v1143 = vadd.f32 0.0, %v1142
    %v1144 = vpop.f32.mrb[0].mxu0
    %v1145 = vpop.f32.mrb[0].mxu0
    %v1146 = vadd.f32 0.0, %v1145
    %v1147 = vpop.f32.mrb[0].mxu0
    %1148 = vmatprep.mubr.bf16.mxu0 %v543
    %1149 = vmatmul.mubr.bf16.gmra.mrb[0].mxu0 %v542
    %v1150 = vpop.f32.mrb[0].mxu0
    %v1151 = vadd.f32 0.0, %v1150
    %v1152 = vpop.f32.mrb[0].mxu0
    %v1153 = vpop.f32.mrb[0].mxu0
    %v1154 = vadd.f32 0.0, %v1153
    %v1155 = vpop.f32.mrb[0].mxu0
    %1156 = vmatprep.mubr.bf16.mxu0 %v552
    %1157 = vmatmul.mubr.bf16.gmra.mrb[0].mxu0 %v551
    %v1158 = vpop.f32.mrb[0].mxu0
    %v1159 = vadd.f32 0.0, %v1158
    %v1160 = vpop.f32.mrb[0].mxu0
    %v1161 = vpop.f32.mrb[0].mxu0
    %v1162 = vadd.f32 0.0, %v1161
    %v1163 = vpop.f32.mrb[0].mxu0
    %1164 = vmatprep.mubr.bf16.mxu0 %v561
    %1165 = vmatmul.mubr.bf16.gmra.mrb[0].mxu0 %v560
    %v1166 = vpop.f32.mrb[0].mxu0
    %v1167 = vadd.f32 0.0, %v1166
    %v1168 = vpop.f32.mrb[0].mxu0
    %v1169 = vpop.f32.mrb[0].mxu0
    %v1170 = vadd.f32 0.0, %v1169
    %v1171 = vpop.f32.mrb[0].mxu0
    %1172 = vmatprep.mubr.bf16.mxu0 %v570
    %1173 = vmatmul.mubr.bf16.gmra.mrb[0].mxu0 %v569
    %v1174 = vpop.f32.mrb[0].mxu0
    %v1175 = vadd.f32 0.0, %v1174
    %v1176 = vpop.f32.mrb[0].mxu0
    %v1177 = vpop.f32.mrb[0].mxu0
    %v1178 = vadd.f32 0.0, %v1177
    %v1179 = vpop.f32.mrb[0].mxu0
    %1180 = vmatprep.mubr.bf16.mxu0 %v579
    %1181 = vmatmul.mubr.bf16.gmra.mrb[0].mxu0 %v578
    %v1182 = vpop.f32.mrb[0].mxu0
    %v1183 = vadd.f32 0.0, %v1182
    %v1184 = vpop.f32.mrb[0].mxu0
    %v1185 = vpop.f32.mrb[0].mxu0
    %v1186 = vadd.f32 0.0, %v1185
    %v1187 = vpop.f32.mrb[0].mxu0
    %1188 = vmatprep.mubr.bf16.mxu0 %v588
    %1189 = vmatmul.mubr.bf16.gmra.mrb[0].mxu0 %v587
    %v1190 = vpop.f32.mrb[0].mxu0
    %v1191 = vadd.f32 0.0, %v1190
    %v1192 = vpop.f32.mrb[0].mxu0
    %v1193 = vpop.f32.mrb[0].mxu0
    %v1194 = vadd.f32 0.0, %v1193
    %v1195 = vpop.f32.mrb[0].mxu0
    %1196 = vdwg.mxu0
    %1197 = vmatprep.subr.bf16.mxu0 0
    %1198 = vmatpush1.bf16.msra.mxu0 %v972
    %1199 = vmatprep.subr.bf16.mxu0 0
    %1200 = vmatpush1.bf16.msra.mxu0 %v973
    %1201 = vmatprep.subr.bf16.mxu0 0
    %1202 = vmatpush1.bf16.msra.mxu0 %v974
    %1203 = vmatprep.subr.bf16.mxu0 0
    %1204 = vmatpush1.bf16.msra.mxu0 %v975
    %1205 = vmatprep.subr.bf16.mxu0 0
    %1206 = vmatpush1.bf16.msra.mxu0 %v976
    %1207 = vmatprep.subr.bf16.mxu0 0
    %1208 = vmatpush1.bf16.msra.mxu0 %v977
    %1209 = vmatprep.subr.bf16.mxu0 0
    %1210 = vmatpush1.bf16.msra.mxu0 %v978
    %1211 = vmatprep.subr.bf16.mxu0 0
    %1212 = vmatpush1.bf16.msra.mxu0 %v979
    %1213 = vmatprep.subr.bf16.mxu0 0
    %1214 = vmatpush1.bf16.msra.mxu0 %v980
    %1215 = vmatprep.subr.bf16.mxu0 0
    %1216 = vmatpush1.bf16.msra.mxu0 %v981
    %1217 = vmatprep.subr.bf16.mxu0 0
    %1218 = vmatpush1.bf16.msra.mxu0 %v982
    %1219 = vmatprep.subr.bf16.mxu0 0
    %1220 = vmatpush1.bf16.msra.mxu0 %v983
    %1221 = vmatprep.subr.bf16.mxu0 0
    %1222 = vmatpush1.bf16.msra.mxu0 %v984
    %1223 = vmatprep.subr.bf16.mxu0 0
    %1224 = vmatpush1.bf16.msra.mxu0 %v985
    %1225 = vmatprep.subr.bf16.mxu0 0
    %1226 = vmatpush1.bf16.msra.mxu0 %v986
    %1227 = vmatprep.subr.bf16.mxu0 0
    %1228 = vmatpush1.bf16.msra.mxu0 %v987
    %1229 = vmatprep.mubr.bf16.mxu0 %v527
    %1230 = vmatmul.mubr.bf16.gmra.mrb[0].mxu0 %v526
    %v1231 = vpop.f32.mrb[0].mxu0
    %v1232 = vadd.f32 %v1135, %v1231
    %v1233 = vpop.f32.mrb[0].mxu0
    %v1234 = vpop.f32.mrb[0].mxu0
    %v1235 = vadd.f32 %v1138, %v1234
    %v1236 = vpop.f32.mrb[0].mxu0
    %1237 = vmatprep.mubr.bf16.mxu0 %v536
    %1238 = vmatmul.mubr.bf16.gmra.mrb[0].mxu0 %v535
    %v1239 = vpop.f32.mrb[0].mxu0
    %v1240 = vadd.f32 %v1143, %v1239
    %v1241 = vpop.f32.mrb[0].mxu0
    %v1242 = vpop.f32.mrb[0].mxu0
    %v1243 = vadd.f32 %v1146, %v1242
    %v1244 = vpop.f32.mrb[0].mxu0
    %1245 = vmatprep.mubr.bf16.mxu0 %v545
    %1246 = vmatmul.mubr.bf16.gmra.mrb[0].mxu0 %v544
    %v1247 = vpop.f32.mrb[0].mxu0
    %v1248 = vadd.f32 %v1151, %v1247
    %v1249 = vpop.f32.mrb[0].mxu0
    %v1250 = vpop.f32.mrb[0].mxu0
    %v1251 = vadd.f32 %v1154, %v1250
    %v1252 = vpop.f32.mrb[0].mxu0
    %1253 = vmatprep.mubr.bf16.mxu0 %v554
    %1254 = vmatmul.mubr.bf16.gmra.mrb[0].mxu0 %v553
    %v1255 = vpop.f32.mrb[0].mxu0
    %v1256 = vadd.f32 %v1159, %v1255
    %v1257 = vpop.f32.mrb[0].mxu0
    %v1258 = vpop.f32.mrb[0].mxu0
    %v1259 = vadd.f32 %v1162, %v1258
    %v1260 = vpop.f32.mrb[0].mxu0
    %1261 = vmatprep.mubr.bf16.mxu0 %v563
    %1262 = vmatmul.mubr.bf16.gmra.mrb[0].mxu0 %v562
    %v1263 = vpop.f32.mrb[0].mxu0
    %v1264 = vadd.f32 %v1167, %v1263
    %v1265 = vpop.f32.mrb[0].mxu0
    %v1266 = vpop.f32.mrb[0].mxu0
    %v1267 = vadd.f32 %v1170, %v1266
    %v1268 = vpop.f32.mrb[0].mxu0
    %1269 = vmatprep.mubr.bf16.mxu0 %v572
    %1270 = vmatmul.mubr.bf16.gmra.mrb[0].mxu0 %v571
    %v1271 = vpop.f32.mrb[0].mxu0
    %v1272 = vadd.f32 %v1175, %v1271
    %v1273 = vpop.f32.mrb[0].mxu0
    %v1274 = vpop.f32.mrb[0].mxu0
    %v1275 = vadd.f32 %v1178, %v1274
    %v1276 = vpop.f32.mrb[0].mxu0
    %1277 = vmatprep.mubr.bf16.mxu0 %v581
    %1278 = vmatmul.mubr.bf16.gmra.mrb[0].mxu0 %v580
    %v1279 = vpop.f32.mrb[0].mxu0
    %v1280 = vadd.f32 %v1183, %v1279
    %v1281 = vpop.f32.mrb[0].mxu0
    %v1282 = vpop.f32.mrb[0].mxu0
    %v1283 = vadd.f32 %v1186, %v1282
    %v1284 = vpop.f32.mrb[0].mxu0
    %1285 = vmatprep.mubr.bf16.mxu0 %v590
    %1286 = vmatmul.mubr.bf16.gmra.mrb[0].mxu0 %v589
    %v1287 = vpop.f32.mrb[0].mxu0
    %v1288 = vadd.f32 %v1191, %v1287
    %v1289 = vpop.f32.mrb[0].mxu0
    %v1290 = vpop.f32.mrb[0].mxu0
    %v1291 = vadd.f32 %v1194, %v1290
    %v1292 = vpop.f32.mrb[0].mxu0
    %1293 = vdwg.mxu0
    %1294 = vmatprep.subr.bf16.mxu0 0
    %1295 = vmatpush1.bf16.msra.mxu0 %v988
    %1296 = vmatprep.subr.bf16.mxu0 0
    %1297 = vmatpush1.bf16.msra.mxu0 %v989
    %1298 = vmatprep.subr.bf16.mxu0 0
    %1299 = vmatpush1.bf16.msra.mxu0 %v990
    %1300 = vmatprep.subr.bf16.mxu0 0
    %1301 = vmatpush1.bf16.msra.mxu0 %v991
    %1302 = vmatprep.subr.bf16.mxu0 0
    %1303 = vmatpush1.bf16.msra.mxu0 %v992
    %1304 = vmatprep.subr.bf16.mxu0 0
    %1305 = vmatpush1.bf16.msra.mxu0 %v993
    %1306 = vmatprep.subr.bf16.mxu0 0
    %1307 = vmatpush1.bf16.msra.mxu0 %v994
    %1308 = vmatprep.subr.bf16.mxu0 0
    %1309 = vmatpush1.bf16.msra.mxu0 %v995
    %1310 = vmatprep.subr.bf16.mxu0 0
    %1311 = vmatpush1.bf16.msra.mxu0 %v996
    %1312 = vmatprep.subr.bf16.mxu0 0
    %1313 = vmatpush1.bf16.msra.mxu0 %v997
    %1314 = vmatprep.subr.bf16.mxu0 0
    %1315 = vmatpush1.bf16.msra.mxu0 %v998
    %1316 = vmatprep.subr.bf16.mxu0 0
    %1317 = vmatpush1.bf16.msra.mxu0 %v999
    %1318 = vmatprep.subr.bf16.mxu0 0
    %1319 = vmatpush1.bf16.msra.mxu0 %v1000
    %1320 = vmatprep.subr.bf16.mxu0 0
    %1321 = vmatpush1.bf16.msra.mxu0 %v1001
    %1322 = vmatprep.subr.bf16.mxu0 0
    %1323 = vmatpush1.bf16.msra.mxu0 %v1002
    %1324 = vmatprep.subr.bf16.mxu0 0
    %1325 = vmatpush1.bf16.msra.mxu0 %v1003
    %1326 = vmatprep.mubr.bf16.mxu0 %v529
    %1327 = vmatmul.mubr.bf16.gmra.mrb[0].mxu0 %v528
    %v1328 = vpop.f32.mrb[0].mxu0
    %v1329 = vadd.f32 %v1232, %v1328
    %v1330 = vpop.f32.mrb[0].mxu0
    %v1331 = vpop.f32.mrb[0].mxu0
    %v1332 = vadd.f32 %v1235, %v1331
    %v1333 = vpop.f32.mrb[0].mxu0
    %1334 = vmatprep.mubr.bf16.mxu0 %v538
    %1335 = vmatmul.mubr.bf16.gmra.mrb[0].mxu0 %v537
    %v1336 = vpop.f32.mrb[0].mxu0
    %v1337 = vadd.f32 %v1240, %v1336
    %v1338 = vpop.f32.mrb[0].mxu0
    %v1339 = vpop.f32.mrb[0].mxu0
    %v1340 = vadd.f32 %v1243, %v1339
    %v1341 = vpop.f32.mrb[0].mxu0
    %1342 = vmatprep.mubr.bf16.mxu0 %v547
    %1343 = vmatmul.mubr.bf16.gmra.mrb[0].mxu0 %v546
    %v1344 = vpop.f32.mrb[0].mxu0
    %v1345 = vadd.f32 %v1248, %v1344
    %v1346 = vpop.f32.mrb[0].mxu0
    %v1347 = vpop.f32.mrb[0].mxu0
    %v1348 = vadd.f32 %v1251, %v1347
    %v1349 = vpop.f32.mrb[0].mxu0
    %1350 = vmatprep.mubr.bf16.mxu0 %v556
    %1351 = vmatmul.mubr.bf16.gmra.mrb[0].mxu0 %v555
    %v1352 = vpop.f32.mrb[0].mxu0
    %v1353 = vadd.f32 %v1256, %v1352
    %v1354 = vpop.f32.mrb[0].mxu0
    %v1355 = vpop.f32.mrb[0].mxu0
    %v1356 = vadd.f32 %v1259, %v1355
    %v1357 = vpop.f32.mrb[0].mxu0
    %1358 = vmatprep.mubr.bf16.mxu0 %v565
    %1359 = vmatmul.mubr.bf16.gmra.mrb[0].mxu0 %v564
    %v1360 = vpop.f32.mrb[0].mxu0
    %v1361 = vadd.f32 %v1264, %v1360
    %v1362 = vpop.f32.mrb[0].mxu0
    %v1363 = vpop.f32.mrb[0].mxu0
    %v1364 = vadd.f32 %v1267, %v1363
    %v1365 = vpop.f32.mrb[0].mxu0
    %1366 = vmatprep.mubr.bf16.mxu0 %v574
    %1367 = vmatmul.mubr.bf16.gmra.mrb[0].mxu0 %v573
    %v1368 = vpop.f32.mrb[0].mxu0
    %v1369 = vadd.f32 %v1272, %v1368
    %v1370 = vpop.f32.mrb[0].mxu0
    %v1371 = vpop.f32.mrb[0].mxu0
    %v1372 = vadd.f32 %v1275, %v1371
    %v1373 = vpop.f32.mrb[0].mxu0
    %1374 = vmatprep.mubr.bf16.mxu0 %v583
    %1375 = vmatmul.mubr.bf16.gmra.mrb[0].mxu0 %v582
    %v1376 = vpop.f32.mrb[0].mxu0
    %v1377 = vadd.f32 %v1280, %v1376
    %v1378 = vpop.f32.mrb[0].mxu0
    %v1379 = vpop.f32.mrb[0].mxu0
    %v1380 = vadd.f32 %v1283, %v1379
    %v1381 = vpop.f32.mrb[0].mxu0
    %1382 = vmatprep.mubr.bf16.mxu0 %v592
    %1383 = vmatmul.mubr.bf16.gmra.mrb[0].mxu0 %v591
    %v1384 = vpop.f32.mrb[0].mxu0
    %v1385 = vadd.f32 %v1288, %v1384
    %v1386 = vpop.f32.mrb[0].mxu0
    %v1387 = vpop.f32.mrb[0].mxu0
    %v1388 = vadd.f32 %v1291, %v1387
    %v1389 = vpop.f32.mrb[0].mxu0
    %1390 = vdwg.mxu0
    %1391 = vmatprep.subr.bf16.mxu0 0
    %1392 = vmatpush1.bf16.msra.mxu0 %v1004
    %1393 = vmatprep.subr.bf16.mxu0 0
    %1394 = vmatpush1.bf16.msra.mxu0 %v1005
    %1395 = vmatprep.subr.bf16.mxu0 0
    %1396 = vmatpush1.bf16.msra.mxu0 %v1006
    %1397 = vmatprep.subr.bf16.mxu0 0
    %1398 = vmatpush1.bf16.msra.mxu0 %v1007
    %1399 = vmatprep.subr.bf16.mxu0 0
    %1400 = vmatpush1.bf16.msra.mxu0 %v1008
    %1401 = vmatprep.subr.bf16.mxu0 0
    %1402 = vmatpush1.bf16.msra.mxu0 %v1009
    %1403 = vmatprep.subr.bf16.mxu0 0
    %1404 = vmatpush1.bf16.msra.mxu0 %v1010
    %1405 = vmatprep.subr.bf16.mxu0 0
    %1406 = vmatpush1.bf16.msra.mxu0 %v1011
    %1407 = vmatprep.subr.bf16.mxu0 0
    %1408 = vmatpush1.bf16.msra.mxu0 %v1012
    %1409 = vmatprep.subr.bf16.mxu0 0
    %1410 = vmatpush1.bf16.msra.mxu0 %v1013
    %1411 = vmatprep.subr.bf16.mxu0 0
    %1412 = vmatpush1.bf16.msra.mxu0 %v1014
    %1413 = vmatprep.subr.bf16.mxu0 0
    %1414 = vmatpush1.bf16.msra.mxu0 %v1015
    %1415 = vmatprep.subr.bf16.mxu0 0
    %1416 = vmatpush1.bf16.msra.mxu0 %v1016
    %1417 = vmatprep.subr.bf16.mxu0 0
    %1418 = vmatpush1.bf16.msra.mxu0 %v1017
    %1419 = vmatprep.subr.bf16.mxu0 0
    %1420 = vmatpush1.bf16.msra.mxu0 %v1018
    %1421 = vmatprep.subr.bf16.mxu0 0
    %1422 = vmatpush1.bf16.msra.mxu0 %v1019
    %1423 = vmatprep.mubr.bf16.mxu0 %v531
    %1424 = vmatmul.mubr.bf16.gmra.mrb[0].mxu0 %v530
    %v1425 = vpop.f32.mrb[0].mxu0
    %v1426 = vadd.f32 %v1329, %v1425
    %v1427 = vpop.f32.mrb[0].mxu0
    %v1428 = vpop.f32.mrb[0].mxu0
    %v1429 = vadd.f32 %v1332, %v1428
    %v1430 = vpop.f32.mrb[0].mxu0
    %1431 = vmatprep.mubr.bf16.mxu0 %v540
    %1432 = vmatmul.mubr.bf16.gmra.mrb[0].mxu0 %v539
    %v1433 = vpop.f32.mrb[0].mxu0
    %v1434 = vadd.f32 %v1337, %v1433
    %v1435 = vpop.f32.mrb[0].mxu0
    %v1436 = vpop.f32.mrb[0].mxu0
    %v1437 = vadd.f32 %v1340, %v1436
    %v1438 = vpop.f32.mrb[0].mxu0
    %1439 = vmatprep.mubr.bf16.mxu0 %v549
    %1440 = vmatmul.mubr.bf16.gmra.mrb[0].mxu0 %v548
    %v1441 = vpop.f32.mrb[0].mxu0
    %v1442 = vadd.f32 %v1345, %v1441
    %v1443 = vpop.f32.mrb[0].mxu0
    %v1444 = vpop.f32.mrb[0].mxu0
    %v1445 = vadd.f32 %v1348, %v1444
    %v1446 = vpop.f32.mrb[0].mxu0
    %1447 = vmatprep.mubr.bf16.mxu0 %v558
    %1448 = vmatmul.mubr.bf16.gmra.mrb[0].mxu0 %v557
    %v1449 = vpop.f32.mrb[0].mxu0
    %v1450 = vadd.f32 %v1353, %v1449
    %v1451 = vpop.f32.mrb[0].mxu0
    %v1452 = vpop.f32.mrb[0].mxu0
    %v1453 = vadd.f32 %v1356, %v1452
    %v1454 = vpop.f32.mrb[0].mxu0
    %1455 = vmatprep.mubr.bf16.mxu0 %v567
    %1456 = vmatmul.mubr.bf16.gmra.mrb[0].mxu0 %v566
    %v1457 = vpop.f32.mrb[0].mxu0
    %v1458 = vadd.f32 %v1361, %v1457
    %v1459 = vpop.f32.mrb[0].mxu0
    %v1460 = vpop.f32.mrb[0].mxu0
    %v1461 = vadd.f32 %v1364, %v1460
    %v1462 = vpop.f32.mrb[0].mxu0
    %1463 = vmatprep.mubr.bf16.mxu0 %v576
    %1464 = vmatmul.mubr.bf16.gmra.mrb[0].mxu0 %v575
    %v1465 = vpop.f32.mrb[0].mxu0
    %v1466 = vadd.f32 %v1369, %v1465
    %v1467 = vpop.f32.mrb[0].mxu0
    %v1468 = vpop.f32.mrb[0].mxu0
    %v1469 = vadd.f32 %v1372, %v1468
    %v1470 = vpop.f32.mrb[0].mxu0
    %1471 = vmatprep.mubr.bf16.mxu0 %v585
    %1472 = vmatmul.mubr.bf16.gmra.mrb[0].mxu0 %v584
    %v1473 = vpop.f32.mrb[0].mxu0
    %v1474 = vadd.f32 %v1377, %v1473
    %v1475 = vpop.f32.mrb[0].mxu0
    %v1476 = vpop.f32.mrb[0].mxu0
    %v1477 = vadd.f32 %v1380, %v1476
    %v1478 = vpop.f32.mrb[0].mxu0
    %1479 = vmatprep.mubr.bf16.mxu0 %v594
    %1480 = vmatmul.mubr.bf16.gmra.mrb[0].mxu0 %v593
    %v1481 = vpop.f32.mrb[0].mxu0
    %v1482 = vadd.f32 %v1385, %v1481
    %v1483 = vpop.f32.mrb[0].mxu0
    %v1484 = vpop.f32.mrb[0].mxu0
    %v1485 = vadd.f32 %v1388, %v1484
    %v1486 = vpop.f32.mrb[0].mxu0
    %1487 = vdwg.mxu0
    %1488 = vmatprep.subr.bf16.mxu0 0
    %1489 = vmatpush1.bf16.msra.mxu0 %v1020
    %1490 = vmatprep.subr.bf16.mxu0 0
    %1491 = vmatpush1.bf16.msra.mxu0 %v1021
    %1492 = vmatprep.subr.bf16.mxu0 0
    %1493 = vmatpush1.bf16.msra.mxu0 %v1022
    %1494 = vmatprep.subr.bf16.mxu0 0
    %1495 = vmatpush1.bf16.msra.mxu0 %v1023
    %1496 = vmatprep.subr.bf16.mxu0 0
    %1497 = vmatpush1.bf16.msra.mxu0 %v1024
    %1498 = vmatprep.subr.bf16.mxu0 0
    %1499 = vmatpush1.bf16.msra.mxu0 %v1025
    %1500 = vmatprep.subr.bf16.mxu0 0
    %1501 = vmatpush1.bf16.msra.mxu0 %v1026
    %1502 = vmatprep.subr.bf16.mxu0 0
    %1503 = vmatpush1.bf16.msra.mxu0 %v1027
    %1504 = vmatprep.subr.bf16.mxu0 0
    %1505 = vmatpush1.bf16.msra.mxu0 0
    %1506 = vmatprep.subr.bf16.mxu0 0
    %1507 = vmatpush1.bf16.msra.mxu0 0
    %1508 = vmatprep.subr.bf16.mxu0 0
    %1509 = vmatpush1.bf16.msra.mxu0 0
    %1510 = vmatprep.subr.bf16.mxu0 0
    %1511 = vmatpush1.bf16.msra.mxu0 0
    %1512 = vmatprep.subr.bf16.mxu0 0
    %1513 = vmatpush1.bf16.msra.mxu0 0
    %1514 = vmatprep.subr.bf16.mxu0 0
    %1515 = vmatpush1.bf16.msra.mxu0 0
    %1516 = vmatprep.subr.bf16.mxu0 0
    %1517 = vmatpush1.bf16.msra.mxu0 0
    %1518 = vmatprep.subr.bf16.mxu0 0
    %1519 = vmatpush1.bf16.msra.mxu0 0
    %1520 = vmatprep.mubr.bf16.mxu0 0
    %1521 = vmatmul.mubr.bf16.gmra.mrb[0].mxu0 %v532
    %v1522 = vpop.f32.mrb[0].mxu0
    %v1523 = vadd.f32 %v1426, %v1522
    %v1524 = vpop.f32.mrb[0].mxu0
    %v1525 = vpop.f32.mrb[0].mxu0
    %v1526 = vadd.f32 %v1429, %v1525
    %v1527 = vpop.f32.mrb[0].mxu0
    %1528 = vmatprep.mubr.bf16.mxu0 0
    %1529 = vmatmul.mubr.bf16.gmra.mrb[0].mxu0 %v541
    %v1530 = vpop.f32.mrb[0].mxu0
    %v1531 = vadd.f32 %v1434, %v1530
    %v1532 = vpop.f32.mrb[0].mxu0
    %v1533 = vpop.f32.mrb[0].mxu0
    %v1534 = vadd.f32 %v1437, %v1533
    %v1535 = vpop.f32.mrb[0].mxu0
    %1536 = vmatprep.mubr.bf16.mxu0 0
    %1537 = vmatmul.mubr.bf16.gmra.mrb[0].mxu0 %v550
    %v1538 = vpop.f32.mrb[0].mxu0
    %v1539 = vadd.f32 %v1442, %v1538
    %v1540 = vpop.f32.mrb[0].mxu0
    %v1541 = vpop.f32.mrb[0].mxu0
    %v1542 = vadd.f32 %v1445, %v1541
    %v1543 = vpop.f32.mrb[0].mxu0
    %1544 = vmatprep.mubr.bf16.mxu0 0
    %1545 = vmatmul.mubr.bf16.gmra.mrb[0].mxu0 %v559
    %v1546 = vpop.f32.mrb[0].mxu0
    %v1547 = vadd.f32 %v1450, %v1546
    %v1548 = vpop.f32.mrb[0].mxu0
    %v1549 = vpop.f32.mrb[0].mxu0
    %v1550 = vadd.f32 %v1453, %v1549
    %v1551 = vpop.f32.mrb[0].mxu0
    %1552 = vmatprep.mubr.bf16.mxu0 0
    %1553 = vmatmul.mubr.bf16.gmra.mrb[0].mxu0 %v568
    %v1554 = vpop.f32.mrb[0].mxu0
    %v1555 = vadd.f32 %v1458, %v1554
    %v1556 = vpop.f32.mrb[0].mxu0
    %v1557 = vpop.f32.mrb[0].mxu0
    %v1558 = vadd.f32 %v1461, %v1557
    %v1559 = vpop.f32.mrb[0].mxu0
    %1560 = vmatprep.mubr.bf16.mxu0 0
    %1561 = vmatmul.mubr.bf16.gmra.mrb[0].mxu0 %v577
    %v1562 = vpop.f32.mrb[0].mxu0
    %v1563 = vadd.f32 %v1466, %v1562
    %v1564 = vpop.f32.mrb[0].mxu0
    %v1565 = vpop.f32.mrb[0].mxu0
    %v1566 = vadd.f32 %v1469, %v1565
    %v1567 = vpop.f32.mrb[0].mxu0
    %1568 = vmatprep.mubr.bf16.mxu0 0
    %1569 = vmatmul.mubr.bf16.gmra.mrb[0].mxu0 %v586
    %v1570 = vpop.f32.mrb[0].mxu0
    %v1571 = vadd.f32 %v1474, %v1570
    %v1572 = vpop.f32.mrb[0].mxu0
    %v1573 = vpop.f32.mrb[0].mxu0
    %v1574 = vadd.f32 %v1477, %v1573
    %v1575 = vpop.f32.mrb[0].mxu0
    %1576 = vmatprep.mubr.bf16.mxu0 0
    %1577 = vmatmul.mubr.bf16.gmra.mrb[0].mxu0 %v595
    %v1578 = vpop.f32.mrb[0].mxu0
    %v1579 = vadd.f32 %v1482, %v1578
    %v1580 = vpop.f32.mrb[0].mxu0
    %v1581 = vpop.f32.mrb[0].mxu0
    %v1582 = vadd.f32 %v1485, %v1581
    %v1583 = vpop.f32.mrb[0].mxu0
    %1584 = vdwg.mxu0
    %v1585 = vadd.f32 %v1523, %v1526
    %v1586 = vadd.f32 %v1585, %v1531
    %v1587 = vadd.f32 %v1586, %v1534
    %v1588 = vadd.f32 %v1587, %v1539
    %v1589 = vadd.f32 %v1588, %v1542
    %v1590 = vadd.f32 %v1589, %v1547
    %v1591 = vadd.f32 %v1590, %v1550
    %v1592 = vadd.f32 %v1591, %v1555
    %v1593 = vadd.f32 %v1592, %v1558
    %v1594 = vadd.f32 %v1593, %v1563
    %v1595 = vadd.f32 %v1594, %v1566
    %v1596 = vadd.f32 %v1595, %v1571
    %v1597 = vadd.f32 %v1596, %v1574
    %v1598 = vadd.f32 %v1597, %v1579
    %v1599 = vadd.f32 %v1598, %v1582
    %v1600 = vrot.slane %v1599, 4
    %v1601 = vadd.f32 %v1599, %v1600
    %v1602 = vrot.slane %v1601, 2
    %v1603 = vadd.f32 %v1601, %v1602
    %v1604 = vrot.slane %v1603, 1
    %v1605 = vadd.f32 %v1603, %v1604
    %v1606 = vmul.f32 %v1523, %v1523
    %v1607 = vmul.f32 %v1526, %v1526
    %v1608 = vmul.f32 %v1531, %v1531
    %v1609 = vmul.f32 %v1534, %v1534
    %v1610 = vmul.f32 %v1539, %v1539
    %v1611 = vmul.f32 %v1542, %v1542
    %v1612 = vmul.f32 %v1547, %v1547
    %v1613 = vmul.f32 %v1550, %v1550
    %v1614 = vmul.f32 %v1555, %v1555
    %v1615 = vmul.f32 %v1558, %v1558
    %v1616 = vmul.f32 %v1563, %v1563
    %v1617 = vmul.f32 %v1566, %v1566
    %v1618 = vmul.f32 %v1571, %v1571
    %v1619 = vmul.f32 %v1574, %v1574
    %v1620 = vmul.f32 %v1579, %v1579
    %v1621 = vmul.f32 %v1582, %v1582
    %v1622 = vadd.f32 %v1606, %v1607
    %v1623 = vadd.f32 %v1622, %v1608
    %v1624 = vadd.f32 %v1623, %v1609
    %v1625 = vadd.f32 %v1624, %v1610
    %v1626 = vadd.f32 %v1625, %v1611
    %v1627 = vadd.f32 %v1626, %v1612
    %v1628 = vadd.f32 %v1627, %v1613
    %v1629 = vadd.f32 %v1628, %v1614
    %v1630 = vadd.f32 %v1629, %v1615
    %v1631 = vadd.f32 %v1630, %v1616
    %v1632 = vadd.f32 %v1631, %v1617
    %v1633 = vadd.f32 %v1632, %v1618
    %v1634 = vadd.f32 %v1633, %v1619
    %v1635 = vadd.f32 %v1634, %v1620
    %v1636 = vadd.f32 %v1635, %v1621
    %v1637 = vrot.slane %v1636, 4
    %v1638 = vadd.f32 %v1636, %v1637
    %v1639 = vrot.slane %v1638, 2
    %v1640 = vadd.f32 %v1638, %v1639
    %v1641 = vrot.slane %v1640, 1
    %v1642 = vadd.f32 %v1640, %v1641
    %v1643 = vmul.f32 %v1605, 0.0078125
    %v1644 = vmul.f32 %v1642, 0.0078125
    %v1645 = vmul.f32 %v1643, %v1643
    %v1646 = vsub.f32 %v1644, %v1645
    %v1647 = vmax.f32 %v1646, 0.0
    %v1648 = vadd.f32 %v1647, 1e-05
    %v1649 = vrsqrt.pop %v1648
    %v1650 = vld [vmem:[%s67] sm:$0x1]
    %v1651 = vmul.f32 %v1650, %v1649
    %v1652 = vld [vmem:[%s72] sm:$0x1]
    %v1653 = vmul.f32 %v1643, %v1651
    %v1654 = vsub.f32 %v1652, %v1653
    %v1656 = vlaneseq
    %v1657 = vshrl.u32 %v1656, 7
    %v1658 = vsub.s32 0, %v1657
    %v1659 = vrot.slane %v1651, %v1658
    %v1661 = vmul.f32 %v1523, %v1659
    %v1662 = vmul.f32 %v1526, %v1659
    %v1663 = vmul.f32 %v1531, %v1659
    %v1664 = vmul.f32 %v1534, %v1659
    %v1665 = vmul.f32 %v1539, %v1659
    %v1666 = vmul.f32 %v1542, %v1659
    %v1667 = vmul.f32 %v1547, %v1659
    %v1668 = vmul.f32 %v1550, %v1659
    %v1669 = vmul.f32 %v1555, %v1659
    %v1670 = vmul.f32 %v1558, %v1659
    %v1671 = vmul.f32 %v1563, %v1659
    %v1672 = vmul.f32 %v1566, %v1659
    %v1673 = vmul.f32 %v1571, %v1659
    %v1674 = vmul.f32 %v1574, %v1659
    %v1675 = vmul.f32 %v1579, %v1659
    %v1676 = vmul.f32 %v1582, %v1659
    %v1678 = vlaneseq
    %v1679 = vshrl.u32 %v1678, 7
    %v1680 = vsub.s32 0, %v1679
    %v1681 = vrot.slane %v1654, %v1680
    %v1683 = vadd.f32 %v1661, %v1681
    %v1684 = vadd.f32 %v1662, %v1681
    %v1685 = vadd.f32 %v1663, %v1681
    %v1686 = vadd.f32 %v1664, %v1681
    %v1687 = vadd.f32 %v1665, %v1681
    %v1688 = vadd.f32 %v1666, %v1681
    %v1689 = vadd.f32 %v1667, %v1681
    %v1690 = vadd.f32 %v1668, %v1681
    %v1691 = vadd.f32 %v1669, %v1681
    %v1692 = vadd.f32 %v1670, %v1681
    %v1693 = vadd.f32 %v1671, %v1681
    %v1694 = vadd.f32 %v1672, %v1681
    %v1695 = vadd.f32 %v1673, %v1681
    %v1696 = vadd.f32 %v1674, %v1681
    %v1697 = vadd.f32 %v1675, %v1681
    %v1698 = vadd.f32 %v1676, %v1681
    %v1699 = vmax.f32 %v1683, 0.0
    %v1700 = vmax.f32 %v1684, 0.0
    %v1701 = vmax.f32 %v1685, 0.0
    %v1702 = vmax.f32 %v1686, 0.0
    %v1703 = vmax.f32 %v1687, 0.0
    %v1704 = vmax.f32 %v1688, 0.0
    %v1705 = vmax.f32 %v1689, 0.0
    %v1706 = vmax.f32 %v1690, 0.0
    %v1707 = vmax.f32 %v1691, 0.0
    %v1708 = vmax.f32 %v1692, 0.0
    %v1709 = vmax.f32 %v1693, 0.0
    %v1710 = vmax.f32 %v1694, 0.0
    %v1711 = vmax.f32 %v1695, 0.0
    %v1712 = vmax.f32 %v1696, 0.0
    %v1713 = vmax.f32 %v1697, 0.0
    %v1714 = vmax.f32 %v1698, 0.0
    %1715 = vst [vmem:[#allocation7] sm:$0xff] %v1699
    %1716 = vst [vmem:[#allocation7 + $0x8] sm:$0xff] %v1700
    %1717 = vst [vmem:[#allocation7 + $0x10] sm:$0xff] %v1701
    %1718 = vst [vmem:[#allocation7 + $0x18] sm:$0xff] %v1702
    %1719 = vst [vmem:[#allocation7 + $0x20] sm:$0xff] %v1703
    %1720 = vst [vmem:[#allocation7 + $0x28] sm:$0xff] %v1704
    %1721 = vst [vmem:[#allocation7 + $0x30] sm:$0xff] %v1705
    %1722 = vst [vmem:[#allocation7 + $0x38] sm:$0xff] %v1706
    %1723 = vst [vmem:[#allocation7 + $0x40] sm:$0xff] %v1707
    %1724 = vst [vmem:[#allocation7 + $0x48] sm:$0xff] %v1708
    %1725 = vst [vmem:[#allocation7 + $0x50] sm:$0xff] %v1709
    %1726 = vst [vmem:[#allocation7 + $0x58] sm:$0xff] %v1710
    %1727 = vst [vmem:[#allocation7 + $0x60] sm:$0xff] %v1711
    %1728 = vst [vmem:[#allocation7 + $0x68] sm:$0xff] %v1712
    %1729 = vst [vmem:[#allocation7 + $0x70] sm:$0xff] %v1713
    %1730 = vst [vmem:[#allocation7 + $0x78] sm:$0xff] %v1714
    // Predicated region
    $region26: #{tpu_custom_call.1} parent=1 // pred_check
      _
    $region27: #{tpu_custom_call.1} parent=1 // pred_check_branch
      %1732 = sbr.rel (0) target = $region29
    $region28: #{tpu_custom_call.1} parent=1 // pred_region
      %s1733 = sadd.s32 0, 0
      %s1735 = ssub.s32 2048, 2048
      %1736 = vsyncadd [#allocation4], %s1735
      %s1737 = smul.addr %s1733, 128
      %s1738 = scalar_lea.hbm %s4, %s1737
      %s1739 = sshll.u32 [#allocation7], 4
      %s1740 = int_to_ptr.vmem [resolvable:$true] %s1739
      %1745 = dma.vmem_to_hbm [thread:$0]  %s1740, 2048, %s1738, [#allocation4], 128, 128, 8
    $region29: #{tpu_custom_call.1} parent=1 // pred_fallthru
      _
    // Predicated region
    $region30: #{tpu_custom_call.1} parent=1 // pred_check
      _
    $region31: #{tpu_custom_call.1} parent=1 // pred_check_branch
      %1747 = sbr.rel (0) target = $region33
    $region32: #{tpu_custom_call.1} parent=1 // pred_region
      %1748 = dma.done [#allocation4], 2048
    $region33: #{tpu_custom_call.1} parent=1 // pred_fallthru
      _
    %1749 = vsyncpa [#allocation3], 1
    %1750 = vsyncpa [#allocation6], 1
    %1751 = vsyncpa [#allocation4], 1

</llo_original>
